<compile_context>
chip_gen: v5e
topology: v5e:2x2
jax: 0.10.0
libtpu: 0.0.40
codegen_flags: <defaults>
</compile_context>

<pallas_src>
import functools
import math

import jax
import jax.numpy as jnp
from jax import lax
from jax.experimental import pallas as pl
from jax.experimental.pallas import tpu as pltpu

LN_EPS = 1e-5
L2_EPS = 1e-12

_LAYER_KEYS = ("ln1_g", "ln1_b", "w_qkv", "b_qkv", "w_o", "b_o",
               "ln2_g", "ln2_b", "w_fc", "b_fc", "w_pr", "b_pr")


def _layernorm(x, g, b):
    mu = jnp.mean(x, axis=-1, keepdims=True)
    var = jnp.mean((x - mu) ** 2, axis=-1, keepdims=True)
    return (x - mu) * lax.rsqrt(var + LN_EPS) * g + b


# ---------------- fused transformer kernel (all layers, one call) ----------------
def _transformer_kernel(x_ref, mask_ref,
                        ln1g, ln1b, w_qkv, b_qkv, w_o, b_o,
                        ln2g, ln2b, w_fc, b_fc, w_pr, b_pr,
                        o_ref, qkv_sc, *, num_heads):
    # grid = (batch_tiles, L); the output block index is constant over the layer
    # axis, so o_ref carries the f32 residual stream of the whole batch tile
    # across all L layers while the per-layer weights are streamed in.
    @pl.when(pl.program_id(1) == 0)
    def _():
        o_ref[...] = x_ref[...]

    Bt, T, D = o_ref.shape
    H = num_heads
    dh = D // H
    mask = mask_ref[...]                              # (T, T) additive causal bias, f32

    x = o_ref[...].reshape(Bt * T, D)                 # f32 residual stream

    # --- attention branch ---  (1/sqrt(dh) pre-folded into the Q weights/bias)
    h = _layernorm(x, ln1g[0], ln1b[0])
    qkv = jnp.dot(h.astype(jnp.bfloat16), w_qkv[0],
                  preferred_element_type=jnp.float32) + b_qkv[0]     # (Bt*T, 3D) f32
    qkv_sc[...] = qkv.reshape(Bt, T, 3 * D)           # stage in VMEM; slice the ref per head

    for hh in range(H):
        q = qkv_sc[:, :, hh * dh:(hh + 1) * dh].astype(jnp.bfloat16)            # (Bt,T,dh)
        k = qkv_sc[:, :, D + hh * dh:D + (hh + 1) * dh].astype(jnp.bfloat16)
        v = qkv_sc[:, :, 2 * D + hh * dh:2 * D + (hh + 1) * dh].astype(jnp.bfloat16)
        s = jnp.einsum('bqd,bkd->bqk', q, k,
                       preferred_element_type=jnp.float32) + mask                # (Bt,T,T)
        s = s - jnp.max(s, axis=-1, keepdims=True)
        ps = jnp.exp(s)
        ps = ps * pl.reciprocal(jnp.sum(ps, axis=-1, keepdims=True), approx=True)
        pv = jnp.einsum('bqk,bkd->bqd', ps.astype(jnp.bfloat16), v,
                        preferred_element_type=jnp.float32)                      # (Bt,T,dh)
        # this head's Q slot is dead now -> reuse it for the attention output
        qkv_sc[:, :, hh * dh:(hh + 1) * dh] = pv

    attn = qkv_sc[:, :, 0:D].reshape(Bt * T, D)       # full-width, aligned read
    x = x + jnp.dot(attn.astype(jnp.bfloat16), w_o[0],
                    preferred_element_type=jnp.float32) + b_o[0]

    # --- MLP branch ---
    h2 = _layernorm(x, ln2g[0], ln2b[0])
    m = jnp.dot(h2.astype(jnp.bfloat16), w_fc[0],
                preferred_element_type=jnp.float32) + b_fc[0]
    m = m * jax.nn.sigmoid(1.702 * m)                 # QuickGELU, f32
    x = x + jnp.dot(m.astype(jnp.bfloat16), w_pr[0],
                    preferred_element_type=jnp.float32) + b_pr[0]

    o_ref[...] = x.reshape(Bt, T, D)


def clip_text_transformer(x, p, mask_bias, num_heads):
    B, T, D = x.shape
    L = p["w_qkv"].shape[0]
    FF = p["w_fc"].shape[-1]
    args = [p[k] for k in _LAYER_KEYS]                # stacked (L, ...) arrays

    # per-chip VMEM budget (v7x: 64 MiB, v5e/v6e: 128 MiB) with headroom
    try:
        vmem_cap = int(pltpu.get_tpu_info().vmem_capacity_bytes)
    except Exception:
        vmem_cap = 64 * 2 ** 20                       # conservative fallback
    budget = int(vmem_cap * 0.8)

    streamed = sum(math.prod(a.shape[1:]) * a.dtype.itemsize for a in args)

    def est_vmem(bt):
        io = 4 * bt * T * D * 4                       # x + residual/out blocks, 2 bufs each
        msk = 2 * T * T * 4
        scratch = bt * T * 3 * D * 4                  # qkv / attention-out scratch
        inter = 4 * bt * T * (2 * D + (3 * FF) // 2) + 8 * bt * T * T
        return 2 * streamed + io + msk + scratch + inter

    # batch tile: amortize each layer's weight DMA over Bt sequences.
    target_bt = 8 if vmem_cap <= 80 * 2 ** 20 else 16
    Bt = max(1, min(target_bt, B))
    while Bt > 1 and est_vmem(Bt) > budget:
        Bt //= 2

    B_pad = pl.cdiv(B, Bt) * Bt
    if B_pad != B:
        x = jnp.pad(x, ((0, B_pad - B), (0, 0), (0, 0)))
    n_bt = B_pad // Bt

    vmem_limit = max(32 * 2 ** 20, min(budget, int(est_vmem(Bt) * 1.4)))

    # Megacore: only split the batch-tile axis across cores when each core keeps a
    # big enough tile to stay compute-bound (otherwise weight-DMA bytes double).
    batch_sem = "parallel" if (n_bt >= 2 and Bt >= 4) else "arbitrary"

    def layer_spec(a):
        return pl.BlockSpec((1,) + a.shape[1:], lambda b, l: (l, 0, 0))

    in_specs = [pl.BlockSpec((Bt, T, D), lambda b, l: (b, 0, 0)),    # x (read at l == 0)
                pl.BlockSpec((T, T), lambda b, l: (0, 0))]           # causal bias (fetched once)
    in_specs += [layer_spec(a) for a in args]

    kernel = functools.partial(_transformer_kernel, num_heads=num_heads)
    out = pl.pallas_call(
        kernel,
        out_shape=jax.ShapeDtypeStruct((B_pad, T, D), jnp.float32),
        grid=(n_bt, L),
        in_specs=in_specs,
        out_specs=pl.BlockSpec((Bt, T, D), lambda b, l: (b, 0, 0)),
        scratch_shapes=[pltpu.VMEM((Bt, T, 3 * D), jnp.float32)],
        input_output_aliases={0: 0},                  # x only read at l==0; share HBM with out
        compiler_params=pltpu.CompilerParams(
            dimension_semantics=(batch_sem, "arbitrary"),
            vmem_limit_bytes=vmem_limit),
    )(x, mask_bias, *args)
    return out[:B]


# ---------------- final projection + normalize kernel ----------------
def _final_kernel(x_ref, lng, lnb, wproj, o_ref, *, normalize):
    h = _layernorm(x_ref[...], lng[...], lnb[...])                   # ln_final on EOT rows
    z = jnp.dot(h.astype(jnp.bfloat16), wproj[...],
                preferred_element_type=jnp.float32)                  # text_projection
    if normalize:
        z = z * lax.rsqrt(jnp.sum(z * z, axis=-1, keepdims=True) + L2_EPS)
    o_ref[...] = z


def project_and_normalize(x_eot, ln_g, ln_b, w_proj, normalize=True):
    B, D = x_eot.shape
    E = w_proj.shape[1]
    tile = 128 if B > 128 else max(8, pl.cdiv(B, 8) * 8)             # aligned sublane tiles
    B_pad = pl.cdiv(B, tile) * tile
    if B_pad != B:
        x_eot = jnp.pad(x_eot, ((0, B_pad - B), (0, 0)))
    z = pl.pallas_call(
        functools.partial(_final_kernel, normalize=normalize),
        out_shape=jax.ShapeDtypeStruct((B_pad, E), jnp.float32),
        grid=(B_pad // tile,),
        in_specs=[pl.BlockSpec((tile, D), lambda i: (i, 0)),
                  pl.BlockSpec((1, D), lambda i: (0, 0)),
                  pl.BlockSpec((1, D), lambda i: (0, 0)),
                  pl.BlockSpec((D, E), lambda i: (0, 0))],
        out_specs=pl.BlockSpec((tile, E), lambda i: (i, 0)),
        compiler_params=pltpu.CompilerParams(
            dimension_semantics=("parallel",)),
    )(x_eot, ln_g, ln_b, w_proj)
    return z[:B]


# ---------------- parameter init (synthetic, deterministic) ----------------
def init_params(key, vocab, T, D, FF, E, L, num_heads):
    f32, bf16 = jnp.float32, jnp.bfloat16

    def nrm(k, shape, s=0.02):
        return s * jax.random.normal(k, shape, dtype=f32)

    ks = jax.random.split(key, 8)
    scale = (D // num_heads) ** -0.5
    # fold the attention 1/sqrt(dh) scale into the Q weights/bias (one-time, host side)
    w_qkv = nrm(ks[3], (L, D, 3 * D))
    w_qkv = w_qkv.at[:, :, :D].multiply(scale)
    b_qkv = jnp.zeros((L, 1, 3 * D), f32)
    b_qkv = b_qkv.at[:, :, :D].multiply(scale)
    return {
        "token_emb": nrm(ks[0], (vocab, D)),
        "pos_emb": nrm(ks[1], (T, D), 0.01),
        "text_proj": nrm(ks[2], (D, E)).astype(bf16),
        "ln_f_g": jnp.ones((1, D), f32),
        "ln_f_b": jnp.zeros((1, D), f32),
        # stacked per-layer params (leading L dim); QKV pre-fused into one matmul.
        # (Weights kept bf16; fp8 (v7x) / int8 (v5e/v6e) weight streaming would halve
        #  the HBM bytes but needs numerics validation.)
        "ln1_g": jnp.ones((L, 1, D), f32),
        "ln1_b": jnp.zeros((L, 1, D), f32),
        "w_qkv": w_qkv.astype(bf16),
        "b_qkv": b_qkv,
        "w_o": nrm(ks[4], (L, D, D)).astype(bf16),
        "b_o": jnp.zeros((L, 1, D), f32),
        "ln2_g": jnp.ones((L, 1, D), f32),
        "ln2_b": jnp.zeros((L, 1, D), f32),
        "w_fc": nrm(ks[5], (L, D, FF)).astype(bf16),
        "b_fc": jnp.zeros((L, 1, FF), f32),
        "w_pr": nrm(ks[6], (L, FF, D)).astype(bf16),
        "b_pr": jnp.zeros((L, 1, D), f32),
    }


# ---------------- FrozenCLIPTextEmbedder.forward equivalent ----------------
def frozen_clip_text_embedder_forward(tokens, params, num_heads, normalize=True):
    # TODO(synk): clip.tokenize (BPE) has no Pallas equivalent; integer token ids are the input.
    B, T = tokens.shape
    # token embedding gather + positional embedding (glue, plain JAX)
    x = params["token_emb"][tokens] + params["pos_emb"][None]        # [B, T, D] f32

    # pad the sequence axis to a sublane multiple (77 -> 80 for real CLIP)
    T_pad = max(8, pl.cdiv(T, 8) * 8)
    if T_pad != T:
        x = jnp.pad(x, ((0, 0), (0, T_pad - T), (0, 0)))

    # causal + key-padding additive bias, computed once, dtype-aware large negative
    row = jnp.arange(T_pad, dtype=jnp.int32)[:, None]
    col = jnp.arange(T_pad, dtype=jnp.int32)[None, :]
    neg = float(jnp.finfo(jnp.float32).min) / 2.0
    mask_bias = jnp.where((col <= row) & (col < T), 0.0, neg).astype(jnp.float32)

    # fused transformer (all L layers in one pallas_call, batch-tiled weight streaming)
    x = clip_text_transformer(x, params, mask_bias, num_heads)       # [B, T_pad, D]

    # features at the EOT token (highest token id per sequence)
    eot_idx = jnp.argmax(tokens, axis=-1)
    x_eot = x[jnp.arange(B), eot_idx]                                # [B, D]

    # ln_final + text_projection + optional L2 normalize (Pallas)
    return project_and_normalize(x_eot, params["ln_f_g"], params["ln_f_b"],
                                 params["text_proj"], normalize=normalize)


if __name__ == "__main__":
    # small synthetic config (ViT-L/14 text tower scaled down)
    B, T, D, H, FF, E, L, VOCAB = 2, 8, 32, 4, 128, 32, 2, 64
    EOT_ID = VOCAB - 1

    key = jax.random.PRNGKey(0)
    kp, kt = jax.random.split(key)
    params = init_params(kp, VOCAB, T, D, FF, E, L, H)

    # synthetic "tokenized text": random ids with an EOT (= max id) token inserted
    tokens = jax.random.randint(kt, (B, T), 1, VOCAB - 2, dtype=jnp.int32)
    tokens = tokens.at[0, 5].set(EOT_ID)
    tokens = tokens.at[1, T - 1].set(EOT_ID)

    fwd = jax.jit(functools.partial(frozen_clip_text_embedder_forward,
                                    num_heads=H, normalize=True))
    z = jax.block_until_ready(fwd(tokens, params))

    assert z.shape == (B, E)
    assert bool(jnp.all(jnp.isfinite(z)))
    norms = jnp.linalg.norm(z, axis=1)
    assert bool(jnp.all(jnp.abs(norms - 1.0) < 1e-3))
    print("KERNEL_OK")
</pallas_src>

<mosaic_0001>
module attributes {stable_mosaic.version = 11 : i64} {
  func.func @_final_kernel(%arg0: i32, %arg1: memref<8x32xf32, #tpu.memory_space<vmem>>, %arg2: memref<1x32xf32, #tpu.memory_space<vmem>>, %arg3: memref<1x32xf32, #tpu.memory_space<vmem>>, %arg4: memref<32x32xbf16, #tpu.memory_space<vmem>>, %arg5: memref<8x32xf32, #tpu.memory_space<vmem>>) attributes {dimension_semantics = [#tpu.dimension_semantics<parallel>], iteration_bounds = array<i64: 1>, scalar_prefetch = 0 : i64, scratch_operands = 0 : i64, tpu.core_type = #tpu.core_type<tc>, window_params = [{transform_indices = @transform_0, window_bounds = array<i64: 8, 32>}, {pipeline_mode = #tpu.pipeline_mode<synchronous>, transform_indices = @transform_1, window_bounds = array<i64: 1, 32>}, {pipeline_mode = #tpu.pipeline_mode<synchronous>, transform_indices = @transform_2, window_bounds = array<i64: 1, 32>}, {pipeline_mode = #tpu.pipeline_mode<synchronous>, transform_indices = @transform_3, window_bounds = array<i64: 32, 32>}, {transform_indices = @transform_4, window_bounds = array<i64: 8, 32>}]} {
    %c0 = arith.constant 0 : index
    %c0_0 = arith.constant 0 : index
    %0 = vector.load %arg1[%c0, %c0_0] : memref<8x32xf32, #tpu.memory_space<vmem>>, vector<8x32xf32>
    %c0_1 = arith.constant 0 : index
    %c0_2 = arith.constant 0 : index
    %1 = vector.load %arg2[%c0_1, %c0_2] : memref<1x32xf32, #tpu.memory_space<vmem>>, vector<1x32xf32>
    %c0_3 = arith.constant 0 : index
    %c0_4 = arith.constant 0 : index
    %2 = vector.load %arg3[%c0_3, %c0_4] : memref<1x32xf32, #tpu.memory_space<vmem>>, vector<1x32xf32>
    %cst = arith.constant dense<0.000000e+00> : vector<8xf32>
    %3 = vector.multi_reduction <add>, %0, %cst [1] : vector<8x32xf32> to vector<8xf32>
    %4 = vector.shape_cast %3 : vector<8xf32> to vector<8x1xf32>
    %cst_5 = arith.constant 3.200000e+01 : f32
    %5 = vector.broadcast %cst_5 : f32 to vector<8x1xf32>
    %6 = arith.divf %4, %5 : vector<8x1xf32>
    %7 = vector.broadcast %6 : vector<8x1xf32> to vector<8x32xf32>
    %8 = arith.subf %0, %7 : vector<8x32xf32>
    %9 = arith.mulf %8, %8 : vector<8x32xf32>
    %cst_6 = arith.constant dense<0.000000e+00> : vector<8xf32>
    %10 = vector.multi_reduction <add>, %9, %cst_6 [1] : vector<8x32xf32> to vector<8xf32>
    %11 = vector.shape_cast %10 : vector<8xf32> to vector<8x1xf32>
    %cst_7 = arith.constant 3.200000e+01 : f32
    %12 = vector.broadcast %cst_7 : f32 to vector<8x1xf32>
    %13 = arith.divf %11, %12 : vector<8x1xf32>
    %14 = vector.broadcast %6 : vector<8x1xf32> to vector<8x32xf32>
    %15 = arith.subf %0, %14 : vector<8x32xf32>
    %cst_8 = arith.constant 9.99999974E-6 : f32
    %16 = vector.broadcast %cst_8 : f32 to vector<8x1xf32>
    %17 = arith.addf %13, %16 : vector<8x1xf32>
    %18 = math.rsqrt %17 : vector<8x1xf32>
    %19 = vector.broadcast %18 : vector<8x1xf32> to vector<8x32xf32>
    %20 = arith.mulf %15, %19 : vector<8x32xf32>
    %21 = vector.broadcast %1 : vector<1x32xf32> to vector<8x32xf32>
    %22 = arith.mulf %20, %21 : vector<8x32xf32>
    %23 = vector.broadcast %2 : vector<1x32xf32> to vector<8x32xf32>
    %24 = arith.addf %22, %23 : vector<8x32xf32>
    %25 = arith.truncf %24 : vector<8x32xf32> to vector<8x32xbf16>
    %c0_9 = arith.constant 0 : index
    %c0_10 = arith.constant 0 : index
    %26 = vector.load %arg4[%c0_9, %c0_10] : memref<32x32xbf16, #tpu.memory_space<vmem>>, vector<32x32xbf16>
    %cst_11 = arith.constant dense<0.000000e+00> : vector<8x32xf32>
    %27 = tpu.matmul %25, %26, %cst_11 {dimension_numbers = #tpu.dot_dimension_numbers<[1], [0], [0], [1], [0, 0, 1, 1], [], []>} : vector<8x32xbf16>, vector<32x32xbf16>, vector<8x32xf32> -> vector<8x32xf32>
    %28 = arith.mulf %27, %27 : vector<8x32xf32>
    %cst_12 = arith.constant dense<0.000000e+00> : vector<8xf32>
    %29 = vector.multi_reduction <add>, %28, %cst_12 [1] : vector<8x32xf32> to vector<8xf32>
    %30 = vector.shape_cast %29 : vector<8xf32> to vector<8x1xf32>
    %cst_13 = arith.constant 9.99999996E-13 : f32
    %31 = vector.broadcast %cst_13 : f32 to vector<8x1xf32>
    %32 = arith.addf %30, %31 : vector<8x1xf32>
    %33 = math.rsqrt %32 : vector<8x1xf32>
    %34 = vector.broadcast %33 : vector<8x1xf32> to vector<8x32xf32>
    %35 = arith.mulf %27, %34 : vector<8x32xf32>
    %c0_14 = arith.constant 0 : index
    %c0_15 = arith.constant 0 : index
    %36 = vector.load %arg5[%c0_14, %c0_15] : memref<8x32xf32, #tpu.memory_space<vmem>>, vector<8x32xf32>
    tpu.vector_store %arg5[%c0_14, %c0_15], %35 {strides = array<i32>} : memref<8x32xf32, #tpu.memory_space<vmem>>, vector<8x32xf32>,
    return
  }
  func.func @transform_0(%arg0: i32) -> (i32, i32) {
    %c0_i32 = arith.constant 0 : i32
    %c0_i32_0 = arith.constant 0 : i32
    return %arg0, %c0_i32 : i32, i32
  }
  func.func @transform_1(%arg0: i32) -> (i32, i32) {
    %c0_i32 = arith.constant 0 : i32
    %c0_i32_0 = arith.constant 0 : i32
    %c0_i32_1 = arith.constant 0 : i32
    return %c0_i32, %c0_i32_0 : i32, i32
  }
  func.func @transform_2(%arg0: i32) -> (i32, i32) {
    %c0_i32 = arith.constant 0 : i32
    %c0_i32_0 = arith.constant 0 : i32
    %c0_i32_1 = arith.constant 0 : i32
    return %c0_i32, %c0_i32_0 : i32, i32
  }
  func.func @transform_3(%arg0: i32) -> (i32, i32) {
    %c0_i32 = arith.constant 0 : i32
    %c0_i32_0 = arith.constant 0 : i32
    %c0_i32_1 = arith.constant 0 : i32
    return %c0_i32, %c0_i32_0 : i32, i32
  }
  func.func @transform_4(%arg0: i32) -> (i32, i32) {
    %c0_i32 = arith.constant 0 : i32
    %c0_i32_0 = arith.constant 0 : i32
    return %arg0, %c0_i32 : i32, i32
  }
}

module attributes {stable_mosaic.version = 11 : i64} {
  func.func @_transformer_kernel(%arg0: i32, %arg1: i32, %arg2: memref<2x8x32xf32, #tpu.memory_space<vmem>>, %arg3: memref<8x8xf32, #tpu.memory_space<vmem>>, %arg4: memref<1x1x32xf32, #tpu.memory_space<vmem>>, %arg5: memref<1x1x32xf32, #tpu.memory_space<vmem>>, %arg6: memref<1x32x96xbf16, #tpu.memory_space<vmem>>, %arg7: memref<1x1x96xf32, #tpu.memory_space<vmem>>, %arg8: memref<1x32x32xbf16, #tpu.memory_space<vmem>>, %arg9: memref<1x1x32xf32, #tpu.memory_space<vmem>>, %arg10: memref<1x1x32xf32, #tpu.memory_space<vmem>>, %arg11: memref<1x1x32xf32, #tpu.memory_space<vmem>>, %arg12: memref<1x32x128xbf16, #tpu.memory_space<vmem>>, %arg13: memref<1x1x128xf32, #tpu.memory_space<vmem>>, %arg14: memref<1x128x32xbf16, #tpu.memory_space<vmem>>, %arg15: memref<1x1x32xf32, #tpu.memory_space<vmem>>, %arg16: memref<2x8x32xf32, #tpu.memory_space<vmem>>, %arg17: memref<2x8x96xf32, #tpu.memory_space<vmem>>) attributes {dimension_semantics = [#tpu.dimension_semantics<arbitrary>, #tpu.dimension_semantics<arbitrary>], iteration_bounds = array<i64: 1, 2>, scalar_prefetch = 0 : i64, scratch_operands = 1 : i64, tpu.core_type = #tpu.core_type<tc>, window_params = [{transform_indices = @transform_0, window_bounds = array<i64: 2, 8, 32>}, {pipeline_mode = #tpu.pipeline_mode<synchronous>, transform_indices = @transform_1, window_bounds = array<i64: 8, 8>}, {transform_indices = @transform_2, window_bounds = array<i64: 1, 1, 32>}, {transform_indices = @transform_3, window_bounds = array<i64: 1, 1, 32>}, {transform_indices = @transform_4, window_bounds = array<i64: 1, 32, 96>}, {transform_indices = @transform_5, window_bounds = array<i64: 1, 1, 96>}, {transform_indices = @transform_6, window_bounds = array<i64: 1, 32, 32>}, {transform_indices = @transform_7, window_bounds = array<i64: 1, 1, 32>}, {transform_indices = @transform_8, window_bounds = array<i64: 1, 1, 32>}, {transform_indices = @transform_9, window_bounds = array<i64: 1, 1, 32>}, {transform_indices = @transform_10, window_bounds = array<i64: 1, 32, 128>}, {transform_indices = @transform_11, window_bounds = array<i64: 1, 1, 128>}, {transform_indices = @transform_12, window_bounds = array<i64: 1, 128, 32>}, {transform_indices = @transform_13, window_bounds = array<i64: 1, 1, 32>}, {transform_indices = @transform_14, window_bounds = array<i64: 2, 8, 32>}]} {
    %c0_i32 = arith.constant 0 : i32
    %0 = arith.cmpi eq, %arg1, %c0_i32 : i32
    %1 = arith.extui %0 : i1 to i32
    %c0_i32_0 = arith.constant 0 : i32
    %2 = arith.cmpi ne, %1, %c0_i32_0 : i32
    scf.if %2 {
      %c0_118 = arith.constant 0 : index
      %c0_119 = arith.constant 0 : index
      %c0_120 = arith.constant 0 : index
      %198 = vector.load %arg2[%c0_118, %c0_119, %c0_120] : memref<2x8x32xf32, #tpu.memory_space<vmem>>, vector<2x8x32xf32>
      %c0_121 = arith.constant 0 : index
      %c0_122 = arith.constant 0 : index
      %c0_123 = arith.constant 0 : index
      %199 = vector.load %arg16[%c0_121, %c0_122, %c0_123] : memref<2x8x32xf32, #tpu.memory_space<vmem>>, vector<2x8x32xf32>
      tpu.vector_store %arg16[%c0_121, %c0_122, %c0_123], %198 {strides = array<i32>} : memref<2x8x32xf32, #tpu.memory_space<vmem>>, vector<2x8x32xf32>,
    } else {
    }
    %c0 = arith.constant 0 : index
    %c0_1 = arith.constant 0 : index
    %3 = vector.load %arg3[%c0, %c0_1] : memref<8x8xf32, #tpu.memory_space<vmem>>, vector<8x8xf32>
    %c0_2 = arith.constant 0 : index
    %c0_3 = arith.constant 0 : index
    %c0_4 = arith.constant 0 : index
    %4 = vector.load %arg16[%c0_2, %c0_3, %c0_4] : memref<2x8x32xf32, #tpu.memory_space<vmem>>, vector<2x8x32xf32>
    %5 = vector.shape_cast %4 : vector<2x8x32xf32> to vector<16x32xf32>
    %c0_5 = arith.constant 0 : index
    %c0_6 = arith.constant 0 : index
    %c0_7 = arith.constant 0 : index
    %6 = vector.load %arg4[%c0_5, %c0_6, %c0_7] : memref<1x1x32xf32, #tpu.memory_space<vmem>>, vector<1x1x32xf32>
    %7 = vector.shape_cast %6 : vector<1x1x32xf32> to vector<1x32xf32>
    %c0_8 = arith.constant 0 : index
    %c0_9 = arith.constant 0 : index
    %c0_10 = arith.constant 0 : index
    %8 = vector.load %arg5[%c0_8, %c0_9, %c0_10] : memref<1x1x32xf32, #tpu.memory_space<vmem>>, vector<1x1x32xf32>
    %9 = vector.shape_cast %8 : vector<1x1x32xf32> to vector<1x32xf32>
    %cst = arith.constant dense<0.000000e+00> : vector<16xf32>
    %10 = vector.multi_reduction <add>, %5, %cst [1] : vector<16x32xf32> to vector<16xf32>
    %11 = vector.shape_cast %10 : vector<16xf32> to vector<16x1xf32>
    %cst_11 = arith.constant 3.200000e+01 : f32
    %12 = vector.broadcast %cst_11 : f32 to vector<16x1xf32>
    %13 = arith.divf %11, %12 : vector<16x1xf32>
    %14 = vector.broadcast %13 : vector<16x1xf32> to vector<16x32xf32>
    %15 = arith.subf %5, %14 : vector<16x32xf32>
    %16 = arith.mulf %15, %15 : vector<16x32xf32>
    %cst_12 = arith.constant dense<0.000000e+00> : vector<16xf32>
    %17 = vector.multi_reduction <add>, %16, %cst_12 [1] : vector<16x32xf32> to vector<16xf32>
    %18 = vector.shape_cast %17 : vector<16xf32> to vector<16x1xf32>
    %cst_13 = arith.constant 3.200000e+01 : f32
    %19 = vector.broadcast %cst_13 : f32 to vector<16x1xf32>
    %20 = arith.divf %18, %19 : vector<16x1xf32>
    %21 = vector.broadcast %13 : vector<16x1xf32> to vector<16x32xf32>
    %22 = arith.subf %5, %21 : vector<16x32xf32>
    %cst_14 = arith.constant 9.99999974E-6 : f32
    %23 = vector.broadcast %cst_14 : f32 to vector<16x1xf32>
    %24 = arith.addf %20, %23 : vector<16x1xf32>
    %25 = math.rsqrt %24 : vector<16x1xf32>
    %26 = vector.broadcast %25 : vector<16x1xf32> to vector<16x32xf32>
    %27 = arith.mulf %22, %26 : vector<16x32xf32>
    %28 = vector.broadcast %7 : vector<1x32xf32> to vector<16x32xf32>
    %29 = arith.mulf %27, %28 : vector<16x32xf32>
    %30 = vector.broadcast %9 : vector<1x32xf32> to vector<16x32xf32>
    %31 = arith.addf %29, %30 : vector<16x32xf32>
    %32 = arith.truncf %31 : vector<16x32xf32> to vector<16x32xbf16>
    %c0_15 = arith.constant 0 : index
    %c0_16 = arith.constant 0 : index
    %c0_17 = arith.constant 0 : index
    %33 = vector.load %arg6[%c0_15, %c0_16, %c0_17] : memref<1x32x96xbf16, #tpu.memory_space<vmem>>, vector<1x32x96xbf16>
    %34 = vector.shape_cast %33 : vector<1x32x96xbf16> to vector<32x96xbf16>
    %cst_18 = arith.constant dense<0.000000e+00> : vector<16x96xf32>
    %35 = tpu.matmul %32, %34, %cst_18 {dimension_numbers = #tpu.dot_dimension_numbers<[1], [0], [0], [1], [0, 0, 1, 1], [], []>} : vector<16x32xbf16>, vector<32x96xbf16>, vector<16x96xf32> -> vector<16x96xf32>
    %c0_19 = arith.constant 0 : index
    %c0_20 = arith.constant 0 : index
    %c0_21 = arith.constant 0 : index
    %36 = vector.load %arg7[%c0_19, %c0_20, %c0_21] : memref<1x1x96xf32, #tpu.memory_space<vmem>>, vector<1x1x96xf32>
    %37 = vector.shape_cast %36 : vector<1x1x96xf32> to vector<1x96xf32>
    %38 = vector.broadcast %37 : vector<1x96xf32> to vector<16x96xf32>
    %39 = arith.addf %35, %38 : vector<16x96xf32>
    %40 = vector.shape_cast %39 : vector<16x96xf32> to vector<2x8x96xf32>
    %c0_22 = arith.constant 0 : index
    %c0_23 = arith.constant 0 : index
    %c0_24 = arith.constant 0 : index
    %41 = vector.load %arg17[%c0_22, %c0_23, %c0_24] : memref<2x8x96xf32, #tpu.memory_space<vmem>>, vector<2x8x96xf32>
    tpu.vector_store %arg17[%c0_22, %c0_23, %c0_24], %40 {strides = array<i32>} : memref<2x8x96xf32, #tpu.memory_space<vmem>>, vector<2x8x96xf32>,
    %c0_25 = arith.constant 0 : index
    %c0_26 = arith.constant 0 : index
    %c0_27 = arith.constant 0 : index
    %42 = vector.load %arg17[%c0_25, %c0_26, %c0_27] : memref<2x8x96xf32, #tpu.memory_space<vmem>>, vector<2x8x8xf32>
    %43 = arith.truncf %42 : vector<2x8x8xf32> to vector<2x8x8xbf16>
    %c0_28 = arith.constant 0 : index
    %c0_29 = arith.constant 0 : index
    %c32 = arith.constant 32 : index
    %44 = vector.load %arg17[%c0_28, %c0_29, %c32] : memref<2x8x96xf32, #tpu.memory_space<vmem>>, vector<2x8x8xf32>
    %45 = arith.truncf %44 : vector<2x8x8xf32> to vector<2x8x8xbf16>
    %c0_30 = arith.constant 0 : index
    %c0_31 = arith.constant 0 : index
    %c64 = arith.constant 64 : index
    %46 = vector.load %arg17[%c0_30, %c0_31, %c64] : memref<2x8x96xf32, #tpu.memory_space<vmem>>, vector<2x8x8xf32>
    %47 = arith.truncf %46 : vector<2x8x8xf32> to vector<2x8x8xbf16>
    "tpu.trace_start"() <{level = 10 : i32, message = "bqd,bkd->bqk"}> : () -> ()
    %cst_32 = arith.constant dense<0.000000e+00> : vector<2x8x8xf32>
    %48 = tpu.matmul %43, %45, %cst_32 {dimension_numbers = #tpu.dot_dimension_numbers<[2], [2], [1], [1], [0, 0, 0, 1, 1, 1], [0], [0]>} : vector<2x8x8xbf16>, vector<2x8x8xbf16>, vector<2x8x8xf32> -> vector<2x8x8xf32>
    "tpu.trace_stop"() : () -> ()
    %49 = vector.shape_cast %3 : vector<8x8xf32> to vector<1x8x8xf32>
    %50 = vector.broadcast %49 : vector<1x8x8xf32> to vector<2x8x8xf32>
    %51 = arith.addf %48, %50 : vector<2x8x8xf32>
    %cst_33 = arith.constant dense<0xFF800000> : vector<2x8xf32>
    %52 = vector.multi_reduction <maximumf>, %51, %cst_33 [2] : vector<2x8x8xf32> to vector<2x8xf32>
    %53 = vector.shape_cast %52 : vector<2x8xf32> to vector<2x8x1xf32>
    %54 = vector.broadcast %53 : vector<2x8x1xf32> to vector<2x8x8xf32>
    %55 = arith.subf %51, %54 : vector<2x8x8xf32>
    %56 = math.exp %55 : vector<2x8x8xf32>
    %cst_34 = arith.constant dense<0.000000e+00> : vector<2x8xf32>
    %57 = vector.multi_reduction <add>, %56, %cst_34 [2] : vector<2x8x8xf32> to vector<2x8xf32>
    %58 = vector.shape_cast %57 : vector<2x8xf32> to vector<2x8x1xf32>
    %59 = tpu.reciprocal %58 {approx = true} : vector<2x8x1xf32> -> vector<2x8x1xf32>
    %60 = vector.broadcast %59 : vector<2x8x1xf32> to vector<2x8x8xf32>
    %61 = arith.mulf %56, %60 : vector<2x8x8xf32>
    %62 = arith.truncf %61 : vector<2x8x8xf32> to vector<2x8x8xbf16>
    "tpu.trace_start"() <{level = 10 : i32, message = "bqk,bkd->bqd"}> : () -> ()
    %cst_35 = arith.constant dense<0.000000e+00> : vector<2x8x8xf32>
    %63 = tpu.matmul %62, %47, %cst_35 {dimension_numbers = #tpu.dot_dimension_numbers<[2], [1], [1], [2], [0, 0, 0, 1, 1, 2], [0], [0]>} : vector<2x8x8xbf16>, vector<2x8x8xbf16>, vector<2x8x8xf32> -> vector<2x8x8xf32>
    "tpu.trace_stop"() : () -> ()
    %c0_36 = arith.constant 0 : index
    %c0_37 = arith.constant 0 : index
    %c0_38 = arith.constant 0 : index
    %64 = vector.load %arg17[%c0_36, %c0_37, %c0_38] : memref<2x8x96xf32, #tpu.memory_space<vmem>>, vector<2x8x8xf32>
    tpu.vector_store %arg17[%c0_36, %c0_37, %c0_38], %63 {strides = array<i32>} : memref<2x8x96xf32, #tpu.memory_space<vmem>>, vector<2x8x8xf32>,
    %c0_39 = arith.constant 0 : index
    %c0_40 = arith.constant 0 : index
    %c8 = arith.constant 8 : index
    %65 = vector.load %arg17[%c0_39, %c0_40, %c8] : memref<2x8x96xf32, #tpu.memory_space<vmem>>, vector<2x8x8xf32>
    %66 = arith.truncf %65 : vector<2x8x8xf32> to vector<2x8x8xbf16>
    %c0_41 = arith.constant 0 : index
    %c0_42 = arith.constant 0 : index
    %c40 = arith.constant 40 : index
    %67 = vector.load %arg17[%c0_41, %c0_42, %c40] : memref<2x8x96xf32, #tpu.memory_space<vmem>>, vector<2x8x8xf32>
    %68 = arith.truncf %67 : vector<2x8x8xf32> to vector<2x8x8xbf16>
    %c0_43 = arith.constant 0 : index
    %c0_44 = arith.constant 0 : index
    %c72 = arith.constant 72 : index
    %69 = vector.load %arg17[%c0_43, %c0_44, %c72] : memref<2x8x96xf32, #tpu.memory_space<vmem>>, vector<2x8x8xf32>
    %70 = arith.truncf %69 : vector<2x8x8xf32> to vector<2x8x8xbf16>
    "tpu.trace_start"() <{level = 10 : i32, message = "bqd,bkd->bqk"}> : () -> ()
    %cst_45 = arith.constant dense<0.000000e+00> : vector<2x8x8xf32>
    %71 = tpu.matmul %66, %68, %cst_45 {dimension_numbers = #tpu.dot_dimension_numbers<[2], [2], [1], [1], [0, 0, 0, 1, 1, 1], [0], [0]>} : vector<2x8x8xbf16>, vector<2x8x8xbf16>, vector<2x8x8xf32> -> vector<2x8x8xf32>
    "tpu.trace_stop"() : () -> ()
    %72 = vector.shape_cast %3 : vector<8x8xf32> to vector<1x8x8xf32>
    %73 = vector.broadcast %72 : vector<1x8x8xf32> to vector<2x8x8xf32>
    %74 = arith.addf %71, %73 : vector<2x8x8xf32>
    %cst_46 = arith.constant dense<0xFF800000> : vector<2x8xf32>
    %75 = vector.multi_reduction <maximumf>, %74, %cst_46 [2] : vector<2x8x8xf32> to vector<2x8xf32>
    %76 = vector.shape_cast %75 : vector<2x8xf32> to vector<2x8x1xf32>
    %77 = vector.broadcast %76 : vector<2x8x1xf32> to vector<2x8x8xf32>
    %78 = arith.subf %74, %77 : vector<2x8x8xf32>
    %79 = math.exp %78 : vector<2x8x8xf32>
    %cst_47 = arith.constant dense<0.000000e+00> : vector<2x8xf32>
    %80 = vector.multi_reduction <add>, %79, %cst_47 [2] : vector<2x8x8xf32> to vector<2x8xf32>
    %81 = vector.shape_cast %80 : vector<2x8xf32> to vector<2x8x1xf32>
    %82 = tpu.reciprocal %81 {approx = true} : vector<2x8x1xf32> -> vector<2x8x1xf32>
    %83 = vector.broadcast %82 : vector<2x8x1xf32> to vector<2x8x8xf32>
    %84 = arith.mulf %79, %83 : vector<2x8x8xf32>
    %85 = arith.truncf %84 : vector<2x8x8xf32> to vector<2x8x8xbf16>
    "tpu.trace_start"() <{level = 10 : i32, message = "bqk,bkd->bqd"}> : () -> ()
    %cst_48 = arith.constant dense<0.000000e+00> : vector<2x8x8xf32>
    %86 = tpu.matmul %85, %70, %cst_48 {dimension_numbers = #tpu.dot_dimension_numbers<[2], [1], [1], [2], [0, 0, 0, 1, 1, 2], [0], [0]>} : vector<2x8x8xbf16>, vector<2x8x8xbf16>, vector<2x8x8xf32> -> vector<2x8x8xf32>
    "tpu.trace_stop"() : () -> ()
    %c0_49 = arith.constant 0 : index
    %c0_50 = arith.constant 0 : index
    %c8_51 = arith.constant 8 : index
    %87 = vector.load %arg17[%c0_49, %c0_50, %c8_51] : memref<2x8x96xf32, #tpu.memory_space<vmem>>, vector<2x8x8xf32>
    tpu.vector_store %arg17[%c0_49, %c0_50, %c8_51], %86 {strides = array<i32>} : memref<2x8x96xf32, #tpu.memory_space<vmem>>, vector<2x8x8xf32>,
    %c0_52 = arith.constant 0 : index
    %c0_53 = arith.constant 0 : index
    %c16 = arith.constant 16 : index
    %88 = vector.load %arg17[%c0_52, %c0_53, %c16] : memref<2x8x96xf32, #tpu.memory_space<vmem>>, vector<2x8x8xf32>
    %89 = arith.truncf %88 : vector<2x8x8xf32> to vector<2x8x8xbf16>
    %c0_54 = arith.constant 0 : index
    %c0_55 = arith.constant 0 : index
    %c48 = arith.constant 48 : index
    %90 = vector.load %arg17[%c0_54, %c0_55, %c48] : memref<2x8x96xf32, #tpu.memory_space<vmem>>, vector<2x8x8xf32>
    %91 = arith.truncf %90 : vector<2x8x8xf32> to vector<2x8x8xbf16>
    %c0_56 = arith.constant 0 : index
    %c0_57 = arith.constant 0 : index
    %c80 = arith.constant 80 : index
    %92 = vector.load %arg17[%c0_56, %c0_57, %c80] : memref<2x8x96xf32, #tpu.memory_space<vmem>>, vector<2x8x8xf32>
    %93 = arith.truncf %92 : vector<2x8x8xf32> to vector<2x8x8xbf16>
    "tpu.trace_start"() <{level = 10 : i32, message = "bqd,bkd->bqk"}> : () -> ()
    %cst_58 = arith.constant dense<0.000000e+00> : vector<2x8x8xf32>
    %94 = tpu.matmul %89, %91, %cst_58 {dimension_numbers = #tpu.dot_dimension_numbers<[2], [2], [1], [1], [0, 0, 0, 1, 1, 1], [0], [0]>} : vector<2x8x8xbf16>, vector<2x8x8xbf16>, vector<2x8x8xf32> -> vector<2x8x8xf32>
    "tpu.trace_stop"() : () -> ()
    %95 = vector.shape_cast %3 : vector<8x8xf32> to vector<1x8x8xf32>
    %96 = vector.broadcast %95 : vector<1x8x8xf32> to vector<2x8x8xf32>
    %97 = arith.addf %94, %96 : vector<2x8x8xf32>
    %cst_59 = arith.constant dense<0xFF800000> : vector<2x8xf32>
    %98 = vector.multi_reduction <maximumf>, %97, %cst_59 [2] : vector<2x8x8xf32> to vector<2x8xf32>
    %99 = vector.shape_cast %98 : vector<2x8xf32> to vector<2x8x1xf32>
    %100 = vector.broadcast %99 : vector<2x8x1xf32> to vector<2x8x8xf32>
    %101 = arith.subf %97, %100 : vector<2x8x8xf32>
    %102 = math.exp %101 : vector<2x8x8xf32>
    %cst_60 = arith.constant dense<0.000000e+00> : vector<2x8xf32>
    %103 = vector.multi_reduction <add>, %102, %cst_60 [2] : vector<2x8x8xf32> to vector<2x8xf32>
    %104 = vector.shape_cast %103 : vector<2x8xf32> to vector<2x8x1xf32>
    %105 = tpu.reciprocal %104 {approx = true} : vector<2x8x1xf32> -> vector<2x8x1xf32>
    %106 = vector.broadcast %105 : vector<2x8x1xf32> to vector<2x8x8xf32>
    %107 = arith.mulf %102, %106 : vector<2x8x8xf32>
    %108 = arith.truncf %107 : vector<2x8x8xf32> to vector<2x8x8xbf16>
    "tpu.trace_start"() <{level = 10 : i32, message = "bqk,bkd->bqd"}> : () -> ()
    %cst_61 = arith.constant dense<0.000000e+00> : vector<2x8x8xf32>
    %109 = tpu.matmul %108, %93, %cst_61 {dimension_numbers = #tpu.dot_dimension_numbers<[2], [1], [1], [2], [0, 0, 0, 1, 1, 2], [0], [0]>} : vector<2x8x8xbf16>, vector<2x8x8xbf16>, vector<2x8x8xf32> -> vector<2x8x8xf32>
    "tpu.trace_stop"() : () -> ()
    %c0_62 = arith.constant 0 : index
    %c0_63 = arith.constant 0 : index
    %c16_64 = arith.constant 16 : index
    %110 = vector.load %arg17[%c0_62, %c0_63, %c16_64] : memref<2x8x96xf32, #tpu.memory_space<vmem>>, vector<2x8x8xf32>
    tpu.vector_store %arg17[%c0_62, %c0_63, %c16_64], %109 {strides = array<i32>} : memref<2x8x96xf32, #tpu.memory_space<vmem>>, vector<2x8x8xf32>,
    %c0_65 = arith.constant 0 : index
    %c0_66 = arith.constant 0 : index
    %c24 = arith.constant 24 : index
    %111 = vector.load %arg17[%c0_65, %c0_66, %c24] : memref<2x8x96xf32, #tpu.memory_space<vmem>>, vector<2x8x8xf32>
    %112 = arith.truncf %111 : vector<2x8x8xf32> to vector<2x8x8xbf16>
    %c0_67 = arith.constant 0 : index
    %c0_68 = arith.constant 0 : index
    %c56 = arith.constant 56 : index
    %113 = vector.load %arg17[%c0_67, %c0_68, %c56] : memref<2x8x96xf32, #tpu.memory_space<vmem>>, vector<2x8x8xf32>
    %114 = arith.truncf %113 : vector<2x8x8xf32> to vector<2x8x8xbf16>
    %c0_69 = arith.constant 0 : index
    %c0_70 = arith.constant 0 : index
    %c88 = arith.constant 88 : index
    %115 = vector.load %arg17[%c0_69, %c0_70, %c88] : memref<2x8x96xf32, #tpu.memory_space<vmem>>, vector<2x8x8xf32>
    %116 = arith.truncf %115 : vector<2x8x8xf32> to vector<2x8x8xbf16>
    "tpu.trace_start"() <{level = 10 : i32, message = "bqd,bkd->bqk"}> : () -> ()
    %cst_71 = arith.constant dense<0.000000e+00> : vector<2x8x8xf32>
    %117 = tpu.matmul %112, %114, %cst_71 {dimension_numbers = #tpu.dot_dimension_numbers<[2], [2], [1], [1], [0, 0, 0, 1, 1, 1], [0], [0]>} : vector<2x8x8xbf16>, vector<2x8x8xbf16>, vector<2x8x8xf32> -> vector<2x8x8xf32>
    "tpu.trace_stop"() : () -> ()
    %118 = vector.shape_cast %3 : vector<8x8xf32> to vector<1x8x8xf32>
    %119 = vector.broadcast %118 : vector<1x8x8xf32> to vector<2x8x8xf32>
    %120 = arith.addf %117, %119 : vector<2x8x8xf32>
    %cst_72 = arith.constant dense<0xFF800000> : vector<2x8xf32>
    %121 = vector.multi_reduction <maximumf>, %120, %cst_72 [2] : vector<2x8x8xf32> to vector<2x8xf32>
    %122 = vector.shape_cast %121 : vector<2x8xf32> to vector<2x8x1xf32>
    %123 = vector.broadcast %122 : vector<2x8x1xf32> to vector<2x8x8xf32>
    %124 = arith.subf %120, %123 : vector<2x8x8xf32>
    %125 = math.exp %124 : vector<2x8x8xf32>
    %cst_73 = arith.constant dense<0.000000e+00> : vector<2x8xf32>
    %126 = vector.multi_reduction <add>, %125, %cst_73 [2] : vector<2x8x8xf32> to vector<2x8xf32>
    %127 = vector.shape_cast %126 : vector<2x8xf32> to vector<2x8x1xf32>
    %128 = tpu.reciprocal %127 {approx = true} : vector<2x8x1xf32> -> vector<2x8x1xf32>
    %129 = vector.broadcast %128 : vector<2x8x1xf32> to vector<2x8x8xf32>
    %130 = arith.mulf %125, %129 : vector<2x8x8xf32>
    %131 = arith.truncf %130 : vector<2x8x8xf32> to vector<2x8x8xbf16>
    "tpu.trace_start"() <{level = 10 : i32, message = "bqk,bkd->bqd"}> : () -> ()
    %cst_74 = arith.constant dense<0.000000e+00> : vector<2x8x8xf32>
    %132 = tpu.matmul %131, %116, %cst_74 {dimension_numbers = #tpu.dot_dimension_numbers<[2], [1], [1], [2], [0, 0, 0, 1, 1, 2], [0], [0]>} : vector<2x8x8xbf16>, vector<2x8x8xbf16>, vector<2x8x8xf32> -> vector<2x8x8xf32>
    "tpu.trace_stop"() : () -> ()
    %c0_75 = arith.constant 0 : index
    %c0_76 = arith.constant 0 : index
    %c24_77 = arith.constant 24 : index
    %133 = vector.load %arg17[%c0_75, %c0_76, %c24_77] : memref<2x8x96xf32, #tpu.memory_space<vmem>>, vector<2x8x8xf32>
    tpu.vector_store %arg17[%c0_75, %c0_76, %c24_77], %132 {strides = array<i32>} : memref<2x8x96xf32, #tpu.memory_space<vmem>>, vector<2x8x8xf32>,
    %c0_78 = arith.constant 0 : index
    %c0_79 = arith.constant 0 : index
    %c0_80 = arith.constant 0 : index
    %134 = vector.load %arg17[%c0_78, %c0_79, %c0_80] : memref<2x8x96xf32, #tpu.memory_space<vmem>>, vector<2x8x32xf32>
    %135 = vector.shape_cast %134 : vector<2x8x32xf32> to vector<16x32xf32>
    %136 = arith.truncf %135 : vector<16x32xf32> to vector<16x32xbf16>
    %c0_81 = arith.constant 0 : index
    %c0_82 = arith.constant 0 : index
    %c0_83 = arith.constant 0 : index
    %137 = vector.load %arg8[%c0_81, %c0_82, %c0_83] : memref<1x32x32xbf16, #tpu.memory_space<vmem>>, vector<1x32x32xbf16>
    %138 = vector.shape_cast %137 : vector<1x32x32xbf16> to vector<32x32xbf16>
    %cst_84 = arith.constant dense<0.000000e+00> : vector<16x32xf32>
    %139 = tpu.matmul %136, %138, %cst_84 {dimension_numbers = #tpu.dot_dimension_numbers<[1], [0], [0], [1], [0, 0, 1, 1], [], []>} : vector<16x32xbf16>, vector<32x32xbf16>, vector<16x32xf32> -> vector<16x32xf32>
    %140 = arith.addf %5, %139 : vector<16x32xf32>
    %c0_85 = arith.constant 0 : index
    %c0_86 = arith.constant 0 : index
    %c0_87 = arith.constant 0 : index
    %141 = vector.load %arg9[%c0_85, %c0_86, %c0_87] : memref<1x1x32xf32, #tpu.memory_space<vmem>>, vector<1x1x32xf32>
    %142 = vector.shape_cast %141 : vector<1x1x32xf32> to vector<1x32xf32>
    %143 = vector.broadcast %142 : vector<1x32xf32> to vector<16x32xf32>
    %144 = arith.addf %140, %143 : vector<16x32xf32>
    %c0_88 = arith.constant 0 : index
    %c0_89 = arith.constant 0 : index
    %c0_90 = arith.constant 0 : index
    %145 = vector.load %arg10[%c0_88, %c0_89, %c0_90] : memref<1x1x32xf32, #tpu.memory_space<vmem>>, vector<1x1x32xf32>
    %146 = vector.shape_cast %145 : vector<1x1x32xf32> to vector<1x32xf32>
    %c0_91 = arith.constant 0 : index
    %c0_92 = arith.constant 0 : index
    %c0_93 = arith.constant 0 : index
    %147 = vector.load %arg11[%c0_91, %c0_92, %c0_93] : memref<1x1x32xf32, #tpu.memory_space<vmem>>, vector<1x1x32xf32>
    %148 = vector.shape_cast %147 : vector<1x1x32xf32> to vector<1x32xf32>
    %cst_94 = arith.constant dense<0.000000e+00> : vector<16xf32>
    %149 = vector.multi_reduction <add>, %144, %cst_94 [1] : vector<16x32xf32> to vector<16xf32>
    %150 = vector.shape_cast %149 : vector<16xf32> to vector<16x1xf32>
    %cst_95 = arith.constant 3.200000e+01 : f32
    %151 = vector.broadcast %cst_95 : f32 to vector<16x1xf32>
    %152 = arith.divf %150, %151 : vector<16x1xf32>
    %153 = vector.broadcast %152 : vector<16x1xf32> to vector<16x32xf32>
    %154 = arith.subf %144, %153 : vector<16x32xf32>
    %155 = arith.mulf %154, %154 : vector<16x32xf32>
    %cst_96 = arith.constant dense<0.000000e+00> : vector<16xf32>
    %156 = vector.multi_reduction <add>, %155, %cst_96 [1] : vector<16x32xf32> to vector<16xf32>
    %157 = vector.shape_cast %156 : vector<16xf32> to vector<16x1xf32>
    %cst_97 = arith.constant 3.200000e+01 : f32
    %158 = vector.broadcast %cst_97 : f32 to vector<16x1xf32>
    %159 = arith.divf %157, %158 : vector<16x1xf32>
    %160 = vector.broadcast %152 : vector<16x1xf32> to vector<16x32xf32>
    %161 = arith.subf %144, %160 : vector<16x32xf32>
    %cst_98 = arith.constant 9.99999974E-6 : f32
    %162 = vector.broadcast %cst_98 : f32 to vector<16x1xf32>
    %163 = arith.addf %159, %162 : vector<16x1xf32>
    %164 = math.rsqrt %163 : vector<16x1xf32>
    %165 = vector.broadcast %164 : vector<16x1xf32> to vector<16x32xf32>
    %166 = arith.mulf %161, %165 : vector<16x32xf32>
    %167 = vector.broadcast %146 : vector<1x32xf32> to vector<16x32xf32>
    %168 = arith.mulf %166, %167 : vector<16x32xf32>
    %169 = vector.broadcast %148 : vector<1x32xf32> to vector<16x32xf32>
    %170 = arith.addf %168, %169 : vector<16x32xf32>
    %171 = arith.truncf %170 : vector<16x32xf32> to vector<16x32xbf16>
    %c0_99 = arith.constant 0 : index
    %c0_100 = arith.constant 0 : index
    %c0_101 = arith.constant 0 : index
    %172 = vector.load %arg12[%c0_99, %c0_100, %c0_101] : memref<1x32x128xbf16, #tpu.memory_space<vmem>>, vector<1x32x128xbf16>
    %173 = vector.shape_cast %172 : vector<1x32x128xbf16> to vector<32x128xbf16>
    %cst_102 = arith.constant dense<0.000000e+00> : vector<16x128xf32>
    %174 = tpu.matmul %171, %173, %cst_102 {dimension_numbers = #tpu.dot_dimension_numbers<[1], [0], [0], [1], [0, 0, 1, 1], [], []>} : vector<16x32xbf16>, vector<32x128xbf16>, vector<16x128xf32> -> vector<16x128xf32>
    %c0_103 = arith.constant 0 : index
    %c0_104 = arith.constant 0 : index
    %c0_105 = arith.constant 0 : index
    %175 = vector.load %arg13[%c0_103, %c0_104, %c0_105] : memref<1x1x128xf32, #tpu.memory_space<vmem>>, vector<1x1x128xf32>
    %176 = vector.shape_cast %175 : vector<1x1x128xf32> to vector<1x128xf32>
    %177 = vector.broadcast %176 : vector<1x128xf32> to vector<16x128xf32>
    %178 = arith.addf %174, %177 : vector<16x128xf32>
    %cst_106 = arith.constant 1.702000e+00 : f32
    %179 = vector.broadcast %cst_106 : f32 to vector<16x128xf32>
    %180 = arith.mulf %179, %178 : vector<16x128xf32>
    %181 = arith.negf %180 : vector<16x128xf32>
    %182 = math.exp %181 : vector<16x128xf32>
    %cst_107 = arith.constant 1.000000e+00 : f32
    %183 = vector.broadcast %cst_107 : f32 to vector<16x128xf32>
    %184 = arith.addf %183, %182 : vector<16x128xf32>
    %185 = arith.divf %183, %184 : vector<16x128xf32>
    %186 = arith.mulf %178, %185 : vector<16x128xf32>
    %187 = arith.truncf %186 : vector<16x128xf32> to vector<16x128xbf16>
    %c0_108 = arith.constant 0 : index
    %c0_109 = arith.constant 0 : index
    %c0_110 = arith.constant 0 : index
    %188 = vector.load %arg14[%c0_108, %c0_109, %c0_110] : memref<1x128x32xbf16, #tpu.memory_space<vmem>>, vector<1x128x32xbf16>
    %189 = vector.shape_cast %188 : vector<1x128x32xbf16> to vector<128x32xbf16>
    %cst_111 = arith.constant dense<0.000000e+00> : vector<16x32xf32>
    %190 = tpu.matmul %187, %189, %cst_111 {dimension_numbers = #tpu.dot_dimension_numbers<[1], [0], [0], [1], [0, 0, 1, 1], [], []>} : vector<16x128xbf16>, vector<128x32xbf16>, vector<16x32xf32> -> vector<16x32xf32>
    %191 = arith.addf %144, %190 : vector<16x32xf32>
    %c0_112 = arith.constant 0 : index
    %c0_113 = arith.constant 0 : index
    %c0_114 = arith.constant 0 : index
    %192 = vector.load %arg15[%c0_112, %c0_113, %c0_114] : memref<1x1x32xf32, #tpu.memory_space<vmem>>, vector<1x1x32xf32>
    %193 = vector.shape_cast %192 : vector<1x1x32xf32> to vector<1x32xf32>
    %194 = vector.broadcast %193 : vector<1x32xf32> to vector<16x32xf32>
    %195 = arith.addf %191, %194 : vector<16x32xf32>
    %196 = vector.shape_cast %195 : vector<16x32xf32> to vector<2x8x32xf32>
    %c0_115 = arith.constant 0 : index
    %c0_116 = arith.constant 0 : index
    %c0_117 = arith.constant 0 : index
    %197 = vector.load %arg16[%c0_115, %c0_116, %c0_117] : memref<2x8x32xf32, #tpu.memory_space<vmem>>, vector<2x8x32xf32>
    tpu.vector_store %arg16[%c0_115, %c0_116, %c0_117], %196 {strides = array<i32>} : memref<2x8x32xf32, #tpu.memory_space<vmem>>, vector<2x8x32xf32>,
    return
  }
  func.func @transform_0(%arg0: i32, %arg1: i32) -> (i32, i32, i32) {
    %c0_i32 = arith.constant 0 : i32
    %c0_i32_0 = arith.constant 0 : i32
    %c0_i32_1 = arith.constant 0 : i32
    return %arg0, %c0_i32, %c0_i32_0 : i32, i32, i32
  }
  func.func @transform_1(%arg0: i32, %arg1: i32) -> (i32, i32) {
    %c0_i32 = arith.constant 0 : i32
    %c0_i32_0 = arith.constant 0 : i32
    %c0_i32_1 = arith.constant 0 : i32
    return %c0_i32, %c0_i32_0 : i32, i32
  }
  func.func @transform_2(%arg0: i32, %arg1: i32) -> (i32, i32, i32) {
    %c0_i32 = arith.constant 0 : i32
    %c0_i32_0 = arith.constant 0 : i32
    %c0_i32_1 = arith.constant 0 : i32
    return %arg1, %c0_i32, %c0_i32_0 : i32, i32, i32
  }
  func.func @transform_3(%arg0: i32, %arg1: i32) -> (i32, i32, i32) {
    %c0_i32 = arith.constant 0 : i32
    %c0_i32_0 = arith.constant 0 : i32
    %c0_i32_1 = arith.constant 0 : i32
    return %arg1, %c0_i32, %c0_i32_0 : i32, i32, i32
  }
  func.func @transform_4(%arg0: i32, %arg1: i32) -> (i32, i32, i32) {
    %c0_i32 = arith.constant 0 : i32
    %c0_i32_0 = arith.constant 0 : i32
    %c0_i32_1 = arith.constant 0 : i32
    return %arg1, %c0_i32, %c0_i32_0 : i32, i32, i32
  }
  func.func @transform_5(%arg0: i32, %arg1: i32) -> (i32, i32, i32) {
    %c0_i32 = arith.constant 0 : i32
    %c0_i32_0 = arith.constant 0 : i32
    %c0_i32_1 = arith.constant 0 : i32
    return %arg1, %c0_i32, %c0_i32_0 : i32, i32, i32
  }
  func.func @transform_6(%arg0: i32, %arg1: i32) -> (i32, i32, i32) {
    %c0_i32 = arith.constant 0 : i32
    %c0_i32_0 = arith.constant 0 : i32
    %c0_i32_1 = arith.constant 0 : i32
    return %arg1, %c0_i32, %c0_i32_0 : i32, i32, i32
  }
  func.func @transform_7(%arg0: i32, %arg1: i32) -> (i32, i32, i32) {
    %c0_i32 = arith.constant 0 : i32
    %c0_i32_0 = arith.constant 0 : i32
    %c0_i32_1 = arith.constant 0 : i32
    return %arg1, %c0_i32, %c0_i32_0 : i32, i32, i32
  }
  func.func @transform_8(%arg0: i32, %arg1: i32) -> (i32, i32, i32) {
    %c0_i32 = arith.constant 0 : i32
    %c0_i32_0 = arith.constant 0 : i32
    %c0_i32_1 = arith.constant 0 : i32
    return %arg1, %c0_i32, %c0_i32_0 : i32, i32, i32
  }
  func.func @transform_9(%arg0: i32, %arg1: i32) -> (i32, i32, i32) {
    %c0_i32 = arith.constant 0 : i32
    %c0_i32_0 = arith.constant 0 : i32
    %c0_i32_1 = arith.constant 0 : i32
    return %arg1, %c0_i32, %c0_i32_0 : i32, i32, i32
  }
  func.func @transform_10(%arg0: i32, %arg1: i32) -> (i32, i32, i32) {
    %c0_i32 = arith.constant 0 : i32
    %c0_i32_0 = arith.constant 0 : i32
    %c0_i32_1 = arith.constant 0 : i32
    return %arg1, %c0_i32, %c0_i32_0 : i32, i32, i32
  }
  func.func @transform_11(%arg0: i32, %arg1: i32) -> (i32, i32, i32) {
    %c0_i32 = arith.constant 0 : i32
    %c0_i32_0 = arith.constant 0 : i32
    %c0_i32_1 = arith.constant 0 : i32
    return %arg1, %c0_i32, %c0_i32_0 : i32, i32, i32
  }
  func.func @transform_12(%arg0: i32, %arg1: i32) -> (i32, i32, i32) {
    %c0_i32 = arith.constant 0 : i32
    %c0_i32_0 = arith.constant 0 : i32
    %c0_i32_1 = arith.constant 0 : i32
    return %arg1, %c0_i32, %c0_i32_0 : i32, i32, i32
  }
  func.func @transform_13(%arg0: i32, %arg1: i32) -> (i32, i32, i32) {
    %c0_i32 = arith.constant 0 : i32
    %c0_i32_0 = arith.constant 0 : i32
    %c0_i32_1 = arith.constant 0 : i32
    return %arg1, %c0_i32, %c0_i32_0 : i32, i32, i32
  }
  func.func @transform_14(%arg0: i32, %arg1: i32) -> (i32, i32, i32) {
    %c0_i32 = arith.constant 0 : i32
    %c0_i32_0 = arith.constant 0 : i32
    %c0_i32_1 = arith.constant 0 : i32
    return %arg0, %c0_i32, %c0_i32_0 : i32, i32, i32
  }
}

</mosaic_0001>

<llo_original>
// kernel: frozen_clip_text_embedder_forward.3
$region0: #{frozen_clip_text_embedder_forward.3}
  #allocation0 [shape = 'u32[]', space=smem, size = 0x4, offset = 0x4, fixed_abs, tag = 'smem constant byte address 0x4 - core index']
  #allocation1 [shape = 'u32[72,128]{1,0:T(1,128)}', space=vmem, size = 0x9000, scoped, tag = 'internal scratch']
  %s0 = inlined_call_operand.vmem [shape: f32[8,32], index: 0, kind: input, shape index: {}]
  %s1 = inlined_call_operand.vmem [shape: f32[1,32], index: 1, kind: input, shape index: {}]
  %s2 = inlined_call_operand.vmem [shape: f32[1,32], index: 2, kind: input, shape index: {}]
  %s3 = inlined_call_operand.vmem [shape: bf16[32,32], index: 3, kind: input, shape index: {}]
  %s4 = inlined_call_operand.vmem [shape: f32[8,32], index: 4, kind: output, shape index: {}]
  %s5 = sld [smem:[#allocation0]]
  $region26: #{frozen_clip_text_embedder_forward.3} parent=0
    _
  %s7 = ssub.s32 1, %s5
  %s8 = scalar_select 0, %s7, %s5
  // Predicated region
  $region2: #{frozen_clip_text_embedder_forward.3} parent=0 // pred_check
    _
  $region3: #{frozen_clip_text_embedder_forward.3} parent=0 // pred_check_branch
    %10 = sbr.rel (0) target = $region5
  $region4: #{frozen_clip_text_embedder_forward.3} parent=0 // pred_region
    _
  $region5: #{frozen_clip_text_embedder_forward.3} parent=0 // pred_fallthru
    _
  // Predicated region
  $region6: #{frozen_clip_text_embedder_forward.3} parent=0 // pred_check
    _
  $region7: #{frozen_clip_text_embedder_forward.3} parent=0 // pred_check_branch
    %12 = sbr.rel (0) target = $region9
  $region8: #{frozen_clip_text_embedder_forward.3} parent=0 // pred_region
    _
  $region9: #{frozen_clip_text_embedder_forward.3} parent=0 // pred_fallthru
    _
  // Predicated region
  $region10: #{frozen_clip_text_embedder_forward.3} parent=0 // pred_check
    _
  $region11: #{frozen_clip_text_embedder_forward.3} parent=0 // pred_check_branch
    %14 = sbr.rel (0) target = $region13
  $region12: #{frozen_clip_text_embedder_forward.3} parent=0 // pred_region
    _
  $region13: #{frozen_clip_text_embedder_forward.3} parent=0 // pred_fallthru
    _
  // Predicated region
  $region14: #{frozen_clip_text_embedder_forward.3} parent=0 // pred_check
    _
  $region15: #{frozen_clip_text_embedder_forward.3} parent=0 // pred_check_branch
    %16 = sbr.rel (0) target = $region17
  $region16: #{frozen_clip_text_embedder_forward.3} parent=0 // pred_region
    _
  $region17: #{frozen_clip_text_embedder_forward.3} parent=0 // pred_fallthru
    _
  %v18 = vld [vmem:[%s0] sm:$0xff]
  %v19 = vld [vmem:[%s1] sm:$0x1]
  %v20 = vld [vmem:[%s2] sm:$0x1]
  %vm21 = vcmask 261120
  %v22 = vsel %vm21, %v18, 0.0
  %23 = vadd.xlane.f32.xlu0 %v22
  %v24 = vpop.xlane.xlu0 %23
  %v25 = vrcp.pop 32.0
  %v26 = vmul.f32 32.0, %v25
  %v27 = vsub.f32 1.0, %v26
  %v28 = vmul.f32 %v25, %v27
  %v29 = vadd.f32 %v25, %v28
  %vm30 = vweird.f32 %v25
  %v31 = vsel %vm30, %v25, %v29
  %v32 = vmul.f32 %v24, %v31
  %v33 = vsub.f32 %v18, %v32
  %v34 = vmul.f32 %v33, %v33
  %v35 = vsel %vm21, %v34, 0.0
  %36 = vadd.xlane.f32.xlu0 %v35
  %v37 = vpop.xlane.xlu0 %36
  %v38 = vmul.f32 %v37, %v31
  %v39 = vadd.f32 %v38, 1e-05
  %v40 = vrsqrt.pop %v39
  %v41 = vmul.f32 %v40, %v39
  %v42 = vmul.f32 %v41, %v40
  %v43 = vmul.f32 0.5, %v42
  %v44 = vsub.f32 1.5, %v43
  %v45 = vmul.f32 %v40, %v44
  %vm46 = vweird.f32 %v39
  %vm47 = vweird.f32 %v40
  %vm48 = vmor %vm46, %vm47
  %v49 = vsel %vm48, %v40, %v45
  %v50 = vmul.f32 %v33, %v49
  %v52 = vperm.slane %v19, 0
  %v54 = vmul.f32 %v50, %v52
  %v56 = vperm.slane %v20, 0
  %v58 = vadd.f32 %v54, %v56
  %v59 = vpack.c.bf16 %v58, %v58
  %v60 = vld [vmem:[%s3] sm:$0xf]
  %v61 = vld [vmem:[%s3 + $0x4] sm:$0xf]
  %v62 = vld [vmem:[%s3 + $0x8] sm:$0xf]
  %v63 = vld [vmem:[%s3 + $0xc] sm:$0xf]
  %v68 = vunpack.c.l.b16 %v60
  %v69 = vunpack.c.l.b16 %v61
  %v70 = vunpack.c.l.b16 %v62
  %v71 = vunpack.c.l.b16 %v63
  %v72 = vpack.c.b16 %v69, %v68
  %v73 = vpack.c.b16 %v71, %v70
  %v77 = vsel %vm21, %v59, 0
  %79 = vmatpush.bf16.msra.mxu0 0
  %80 = vmatpush.bf16.msra.mxu0 0
  %81 = vmatpush.bf16.msra.mxu0 0
  %82 = vmatpush.bf16.msra.mxu0 0
  %83 = vmatpush.bf16.msra.mxu0 0
  %84 = vmatpush.bf16.msra.mxu0 0
  %85 = vmatpush.bf16.msra.mxu0 %v73
  %86 = vmatpush.bf16.msra.mxu0 %v72
  %87 = vmatmul.bf16.gmra.mxu0 %v77
  %v88 = vpop.f32.mrf.mxu0
  %v89 = vadd.f32 0.0, %v88
  %v90 = vpop.f32.mrf.mxu0
  %91 = vdwg.mxu0
  %v92 = vmul.f32 %v89, %v89
  %v93 = vsel %vm21, %v92, 0.0
  %94 = vadd.xlane.f32.xlu0 %v93
  %v95 = vpop.xlane.xlu0 %94
  %v96 = vadd.f32 %v95, 1e-12
  %v97 = vrsqrt.pop %v96
  %v98 = vmul.f32 %v97, %v96
  %v99 = vmul.f32 %v98, %v97
  %v100 = vmul.f32 0.5, %v99
  %v101 = vsub.f32 1.5, %v100
  %v102 = vmul.f32 %v97, %v101
  %vm103 = vweird.f32 %v96
  %vm104 = vweird.f32 %v97
  %vm105 = vmor %vm103, %vm104
  %v106 = vsel %vm105, %v97, %v102
  %v107 = vmul.f32 %v89, %v106
  %108 = vst.msk [vmem:[%s4] sm:$0xff] %vm21, %v107
  // Predicated region
  $region18: #{frozen_clip_text_embedder_forward.3} parent=0 // pred_check
    _
  $region19: #{frozen_clip_text_embedder_forward.3} parent=0 // pred_check_branch
    %110 = sbr.rel (0) target = $region21
  $region20: #{frozen_clip_text_embedder_forward.3} parent=0 // pred_region
    _
  $region21: #{frozen_clip_text_embedder_forward.3} parent=0 // pred_fallthru
    _
  // Predicated region
  $region22: #{frozen_clip_text_embedder_forward.3} parent=0 // pred_check
    _
  $region23: #{frozen_clip_text_embedder_forward.3} parent=0 // pred_check_branch
    %112 = sbr.rel (0) target = $region25
  $region24: #{frozen_clip_text_embedder_forward.3} parent=0 // pred_region
    _
  $region25: #{frozen_clip_text_embedder_forward.3} parent=0 // pred_fallthru
    _

// kernel: frozen_clip_text_embedder_forward.2
$region0: #{frozen_clip_text_embedder_forward.2}
  #allocation0 [shape = 'u32[]', space=smem, size = 0x4, offset = 0x4, fixed_abs, tag = 'smem constant byte address 0x4 - core index']
  #allocation1 [shape = 'u32[72,128]{1,0:T(1,128)}', space=vmem, size = 0x9000, scoped, tag = 'internal scratch']
  #allocation2 [shape = 'f32[2,8,96]{2,1,0:T(8,128)}', space=vmem, size = 0x2000, scoped, tag = 'scratch operand']
  %s0 = inlined_call_operand.vmem [shape: f32[2,8,32], index: 0, kind: input, shape index: {}, may-alias: {0,14}]
  %s1 = inlined_call_operand.vmem [shape: f32[8,8], index: 1, kind: input, shape index: {}]
  %s2 = inlined_call_operand.vmem [shape: f32[2,1,32], index: 2, kind: input, shape index: {}]
  %s3 = inlined_call_operand.vmem [shape: f32[2,1,32], index: 3, kind: input, shape index: {}]
  %s4 = inlined_call_operand.vmem [shape: bf16[2,32,96], index: 4, kind: input, shape index: {}]
  %s5 = inlined_call_operand.vmem [shape: f32[2,1,96], index: 5, kind: input, shape index: {}]
  %s6 = inlined_call_operand.vmem [shape: bf16[2,32,32], index: 6, kind: input, shape index: {}]
  %s7 = inlined_call_operand.vmem [shape: f32[2,1,32], index: 7, kind: input, shape index: {}]
  %s8 = inlined_call_operand.vmem [shape: f32[2,1,32], index: 8, kind: input, shape index: {}]
  %s9 = inlined_call_operand.vmem [shape: f32[2,1,32], index: 9, kind: input, shape index: {}]
  %s10 = inlined_call_operand.vmem [shape: bf16[2,32,128], index: 10, kind: input, shape index: {}]
  %s11 = inlined_call_operand.vmem [shape: f32[2,1,128], index: 11, kind: input, shape index: {}]
  %s12 = inlined_call_operand.vmem [shape: bf16[2,128,32], index: 12, kind: input, shape index: {}]
  %s13 = inlined_call_operand.vmem [shape: f32[2,1,32], index: 13, kind: input, shape index: {}]
  %s14 = inlined_call_operand.vmem [shape: f32[2,8,32], index: 14, kind: output, shape index: {}, may-alias: {0,14}]
  %s15 = sld [smem:[#allocation0]]
  $region93: #{frozen_clip_text_embedder_forward.2} parent=0
    _
  %s17 = ssub.s32 1, %s15
  %s18 = scalar_select 0, %s17, %s15
  loop: start=0, step=1, limit=4
  $region2: #{frozen_clip_text_embedder_forward.2} parent=0 // loop_pre_header
    _
  $region3: #{frozen_clip_text_embedder_forward.2} parent=0 // loop_header
    %s20 = sphi 0, %s24
    %p21 = scmp.ge.s32.totalorder %s20, 4
    %s27 = sphi 0, %s39
    %s28 = sphi 0, %s35
    %s29 = sphi 0, %s27
    %s30 = sphi 0, %s28
    %s31 = sphi 0, %s29
    %s32 = sphi 0, %s30
    %s42 = sphi 0, %s44
    %s45 = sphi 0, %s42
    %s46 = sphi 0, %s45
    %s62 = sphi 0, %s46
    %s66 = sphi 0, %s66
    %s68 = sphi 0, %s66
    %s69 = sphi 0, %s68
    %s83 = sphi 0, %s69
    %s89 = sphi 0, %s91
    %s92 = sphi 0, %s89
    %s93 = sphi 0, %s92
    %s109 = sphi 0, %s93
    %s115 = sphi 0, %s117
    %s118 = sphi 0, %s115
    %s119 = sphi 0, %s118
    %s135 = sphi 0, %s119
    %s141 = sphi 0, %s143
    %s144 = sphi 0, %s141
    %s145 = sphi 0, %s144
    %s161 = sphi 0, %s145
    %s167 = sphi 0, %s169
    %s170 = sphi 0, %s167
    %s171 = sphi 0, %s170
    %s187 = sphi 0, %s171
    %s193 = sphi 0, %s195
    %s196 = sphi 0, %s193
    %s197 = sphi 0, %s196
    %s213 = sphi 0, %s197
    %s219 = sphi 0, %s221
    %s222 = sphi 0, %s219
    %s223 = sphi 0, %s222
    %s239 = sphi 0, %s223
    %s245 = sphi 0, %s247
    %s248 = sphi 0, %s245
    %s249 = sphi 0, %s248
    %s265 = sphi 0, %s249
    %s271 = sphi 0, %s273
    %s274 = sphi 0, %s271
    %s275 = sphi 0, %s274
    %s291 = sphi 0, %s275
    %s297 = sphi 0, %s299
    %s300 = sphi 0, %s297
    %s301 = sphi 0, %s300
    %s317 = sphi 0, %s301
    %s323 = sphi 0, %s325
    %s326 = sphi 0, %s323
    %s327 = sphi 0, %s326
    %s343 = sphi 0, %s327
    %s349 = sphi 0, %s351
    %s352 = sphi 0, %s349
    %s353 = sphi 0, %s352
    %s369 = sphi 0, %s353
    %s375 = sphi 0, %s377
    %s378 = sphi 0, %s375
    %s379 = sphi 0, %s378
    %s395 = sphi 0, %s379
    %s401 = sphi 0, %s403
    %s404 = sphi 0, %s401
    %s405 = sphi 0, %s404
    %s421 = sphi 0, %s405
  $region4: #{frozen_clip_text_embedder_forward.2} parent=0 // loop_header_branch
    %23 = sbr.rel (%p21) target = $region8
  $region5: #{frozen_clip_text_embedder_forward.2} parent=0 // loop_body
    %s25 = ssub.s32 %s20, 1
    %s26 = ssub.s32 %s20, 2
    %s33 = sadd.s32 1, %s28
    %p34 = scmp.ge.s32.totalorder %s33, 2
    %s35 = scalar_select %p34, 0, %s33
    %s36 = sadd.s32 1, %s27
    %s37 = scalar_select %p34, %s36, %s27
    %p38 = scmp.ge.s32.totalorder %s37, 1
    %s39 = scalar_select %p38, 0, %s37
    %s40 = ssub.s32 %s27, %s39
    %p41 = scmp.eq.s32.totalorder %s40, 0
    %s43 = sadd.s32 %s42, 1
    %s44 = scalar_select %p41, %s42, %s43
    %p47 = pneg %p41
    %p48 = scmp.eq.s32.totalorder %s20, 1
    %p49 = por %p47, %p48
    %p50 = scmp.ne.s32.totalorder %s42, %s45
    %p51 = scmp.eq.s32.totalorder %s20, 0
    %p52 = por %p50, %p51
    %p53 = scmp.ne.s32.totalorder %s42, %s45
    %p54 = scmp.eq.s32.totalorder %s25, 1
    %p55 = por %p53, %p54
    %p56 = scmp.ne.s32.totalorder %s45, %s46
    %p57 = scmp.eq.s32.totalorder %s25, 0
    %p58 = por %p56, %p57
    %p59 = scmp.ne.s32.totalorder %s45, %s46
    %p60 = scmp.eq.s32.totalorder %s26, 1
    %p61 = por %p59, %p60
    %p63 = scmp.ne.s32.totalorder %s46, %s62
    %p64 = scmp.eq.s32.totalorder %s26, 0
    %p65 = por %p63, %p64
    %s67 = sadd.s32 %s66, 1
    %p70 = scmp.eq.s32.totalorder %s20, 1
    %p71 = scmp.ne.s32.totalorder %s66, %s68
    %p72 = scmp.eq.s32.totalorder %s20, 0
    %p73 = por %p71, %p72
    %p74 = scmp.ne.s32.totalorder %s66, %s68
    %p75 = scmp.eq.s32.totalorder %s25, 1
    %p76 = por %p74, %p75
    %p77 = scmp.ne.s32.totalorder %s68, %s69
    %p78 = scmp.eq.s32.totalorder %s25, 0
    %p79 = por %p77, %p78
    %p80 = scmp.ne.s32.totalorder %s68, %s69
    %p81 = scmp.eq.s32.totalorder %s26, 1
    %p82 = por %p80, %p81
    %p84 = scmp.ne.s32.totalorder %s69, %s83
    %p85 = scmp.eq.s32.totalorder %s26, 0
    %p86 = por %p84, %p85
    %s87 = ssub.s32 %s28, %s35
    %p88 = scmp.eq.s32.totalorder %s87, 0
    %s90 = sadd.s32 %s89, 1
    %s91 = scalar_select %p88, %s89, %s90
    %p94 = pneg %p88
    %p95 = scmp.eq.s32.totalorder %s20, 1
    %p96 = por %p94, %p95
    %p97 = scmp.ne.s32.totalorder %s89, %s92
    %p98 = scmp.eq.s32.totalorder %s20, 0
    %p99 = por %p97, %p98
    %p100 = scmp.ne.s32.totalorder %s89, %s92
    %p101 = scmp.eq.s32.totalorder %s25, 1
    %p102 = por %p100, %p101
    %p103 = scmp.ne.s32.totalorder %s92, %s93
    %p104 = scmp.eq.s32.totalorder %s25, 0
    %p105 = por %p103, %p104
    %p106 = scmp.ne.s32.totalorder %s92, %s93
    %p107 = scmp.eq.s32.totalorder %s26, 1
    %p108 = por %p106, %p107
    %p110 = scmp.ne.s32.totalorder %s93, %s109
    %p111 = scmp.eq.s32.totalorder %s26, 0
    %p112 = por %p110, %p111
    %s113 = ssub.s32 %s28, %s35
    %p114 = scmp.eq.s32.totalorder %s113, 0
    %s116 = sadd.s32 %s115, 1
    %s117 = scalar_select %p114, %s115, %s116
    %p120 = pneg %p114
    %p121 = scmp.eq.s32.totalorder %s20, 1
    %p122 = por %p120, %p121
    %p123 = scmp.ne.s32.totalorder %s115, %s118
    %p124 = scmp.eq.s32.totalorder %s20, 0
    %p125 = por %p123, %p124
    %p126 = scmp.ne.s32.totalorder %s115, %s118
    %p127 = scmp.eq.s32.totalorder %s25, 1
    %p128 = por %p126, %p127
    %p129 = scmp.ne.s32.totalorder %s118, %s119
    %p130 = scmp.eq.s32.totalorder %s25, 0
    %p131 = por %p129, %p130
    %p132 = scmp.ne.s32.totalorder %s118, %s119
    %p133 = scmp.eq.s32.totalorder %s26, 1
    %p134 = por %p132, %p133
    %p136 = scmp.ne.s32.totalorder %s119, %s135
    %p137 = scmp.eq.s32.totalorder %s26, 0
    %p138 = por %p136, %p137
    %s139 = ssub.s32 %s28, %s35
    %p140 = scmp.eq.s32.totalorder %s139, 0
    %s142 = sadd.s32 %s141, 1
    %s143 = scalar_select %p140, %s141, %s142
    %p146 = pneg %p140
    %p147 = scmp.eq.s32.totalorder %s20, 1
    %p148 = por %p146, %p147
    %p149 = scmp.ne.s32.totalorder %s141, %s144
    %p150 = scmp.eq.s32.totalorder %s20, 0
    %p151 = por %p149, %p150
    %p152 = scmp.ne.s32.totalorder %s141, %s144
    %p153 = scmp.eq.s32.totalorder %s25, 1
    %p154 = por %p152, %p153
    %p155 = scmp.ne.s32.totalorder %s144, %s145
    %p156 = scmp.eq.s32.totalorder %s25, 0
    %p157 = por %p155, %p156
    %p158 = scmp.ne.s32.totalorder %s144, %s145
    %p159 = scmp.eq.s32.totalorder %s26, 1
    %p160 = por %p158, %p159
    %p162 = scmp.ne.s32.totalorder %s145, %s161
    %p163 = scmp.eq.s32.totalorder %s26, 0
    %p164 = por %p162, %p163
    %s165 = ssub.s32 %s28, %s35
    %p166 = scmp.eq.s32.totalorder %s165, 0
    %s168 = sadd.s32 %s167, 1
    %s169 = scalar_select %p166, %s167, %s168
    %p172 = pneg %p166
    %p173 = scmp.eq.s32.totalorder %s20, 1
    %p174 = por %p172, %p173
    %p175 = scmp.ne.s32.totalorder %s167, %s170
    %p176 = scmp.eq.s32.totalorder %s20, 0
    %p177 = por %p175, %p176
    %p178 = scmp.ne.s32.totalorder %s167, %s170
    %p179 = scmp.eq.s32.totalorder %s25, 1
    %p180 = por %p178, %p179
    %p181 = scmp.ne.s32.totalorder %s170, %s171
    %p182 = scmp.eq.s32.totalorder %s25, 0
    %p183 = por %p181, %p182
    %p184 = scmp.ne.s32.totalorder %s170, %s171
    %p185 = scmp.eq.s32.totalorder %s26, 1
    %p186 = por %p184, %p185
    %p188 = scmp.ne.s32.totalorder %s171, %s187
    %p189 = scmp.eq.s32.totalorder %s26, 0
    %p190 = por %p188, %p189
    %s191 = ssub.s32 %s28, %s35
    %p192 = scmp.eq.s32.totalorder %s191, 0
    %s194 = sadd.s32 %s193, 1
    %s195 = scalar_select %p192, %s193, %s194
    %p198 = pneg %p192
    %p199 = scmp.eq.s32.totalorder %s20, 1
    %p200 = por %p198, %p199
    %p201 = scmp.ne.s32.totalorder %s193, %s196
    %p202 = scmp.eq.s32.totalorder %s20, 0
    %p203 = por %p201, %p202
    %p204 = scmp.ne.s32.totalorder %s193, %s196
    %p205 = scmp.eq.s32.totalorder %s25, 1
    %p206 = por %p204, %p205
    %p207 = scmp.ne.s32.totalorder %s196, %s197
    %p208 = scmp.eq.s32.totalorder %s25, 0
    %p209 = por %p207, %p208
    %p210 = scmp.ne.s32.totalorder %s196, %s197
    %p211 = scmp.eq.s32.totalorder %s26, 1
    %p212 = por %p210, %p211
    %p214 = scmp.ne.s32.totalorder %s197, %s213
    %p215 = scmp.eq.s32.totalorder %s26, 0
    %p216 = por %p214, %p215
    %s217 = ssub.s32 %s28, %s35
    %p218 = scmp.eq.s32.totalorder %s217, 0
    %s220 = sadd.s32 %s219, 1
    %s221 = scalar_select %p218, %s219, %s220
    %p224 = pneg %p218
    %p225 = scmp.eq.s32.totalorder %s20, 1
    %p226 = por %p224, %p225
    %p227 = scmp.ne.s32.totalorder %s219, %s222
    %p228 = scmp.eq.s32.totalorder %s20, 0
    %p229 = por %p227, %p228
    %p230 = scmp.ne.s32.totalorder %s219, %s222
    %p231 = scmp.eq.s32.totalorder %s25, 1
    %p232 = por %p230, %p231
    %p233 = scmp.ne.s32.totalorder %s222, %s223
    %p234 = scmp.eq.s32.totalorder %s25, 0
    %p235 = por %p233, %p234
    %p236 = scmp.ne.s32.totalorder %s222, %s223
    %p237 = scmp.eq.s32.totalorder %s26, 1
    %p238 = por %p236, %p237
    %p240 = scmp.ne.s32.totalorder %s223, %s239
    %p241 = scmp.eq.s32.totalorder %s26, 0
    %p242 = por %p240, %p241
    %s243 = ssub.s32 %s28, %s35
    %p244 = scmp.eq.s32.totalorder %s243, 0
    %s246 = sadd.s32 %s245, 1
    %s247 = scalar_select %p244, %s245, %s246
    %p250 = pneg %p244
    %p251 = scmp.eq.s32.totalorder %s20, 1
    %p252 = por %p250, %p251
    %p253 = scmp.ne.s32.totalorder %s245, %s248
    %p254 = scmp.eq.s32.totalorder %s20, 0
    %p255 = por %p253, %p254
    %p256 = scmp.ne.s32.totalorder %s245, %s248
    %p257 = scmp.eq.s32.totalorder %s25, 1
    %p258 = por %p256, %p257
    %p259 = scmp.ne.s32.totalorder %s248, %s249
    %p260 = scmp.eq.s32.totalorder %s25, 0
    %p261 = por %p259, %p260
    %p262 = scmp.ne.s32.totalorder %s248, %s249
    %p263 = scmp.eq.s32.totalorder %s26, 1
    %p264 = por %p262, %p263
    %p266 = scmp.ne.s32.totalorder %s249, %s265
    %p267 = scmp.eq.s32.totalorder %s26, 0
    %p268 = por %p266, %p267
    %s269 = ssub.s32 %s28, %s35
    %p270 = scmp.eq.s32.totalorder %s269, 0
    %s272 = sadd.s32 %s271, 1
    %s273 = scalar_select %p270, %s271, %s272
    %p276 = pneg %p270
    %p277 = scmp.eq.s32.totalorder %s20, 1
    %p278 = por %p276, %p277
    %p279 = scmp.ne.s32.totalorder %s271, %s274
    %p280 = scmp.eq.s32.totalorder %s20, 0
    %p281 = por %p279, %p280
    %p282 = scmp.ne.s32.totalorder %s271, %s274
    %p283 = scmp.eq.s32.totalorder %s25, 1
    %p284 = por %p282, %p283
    %p285 = scmp.ne.s32.totalorder %s274, %s275
    %p286 = scmp.eq.s32.totalorder %s25, 0
    %p287 = por %p285, %p286
    %p288 = scmp.ne.s32.totalorder %s274, %s275
    %p289 = scmp.eq.s32.totalorder %s26, 1
    %p290 = por %p288, %p289
    %p292 = scmp.ne.s32.totalorder %s275, %s291
    %p293 = scmp.eq.s32.totalorder %s26, 0
    %p294 = por %p292, %p293
    %s295 = ssub.s32 %s28, %s35
    %p296 = scmp.eq.s32.totalorder %s295, 0
    %s298 = sadd.s32 %s297, 1
    %s299 = scalar_select %p296, %s297, %s298
    %p302 = pneg %p296
    %p303 = scmp.eq.s32.totalorder %s20, 1
    %p304 = por %p302, %p303
    %p305 = scmp.ne.s32.totalorder %s297, %s300
    %p306 = scmp.eq.s32.totalorder %s20, 0
    %p307 = por %p305, %p306
    %p308 = scmp.ne.s32.totalorder %s297, %s300
    %p309 = scmp.eq.s32.totalorder %s25, 1
    %p310 = por %p308, %p309
    %p311 = scmp.ne.s32.totalorder %s300, %s301
    %p312 = scmp.eq.s32.totalorder %s25, 0
    %p313 = por %p311, %p312
    %p314 = scmp.ne.s32.totalorder %s300, %s301
    %p315 = scmp.eq.s32.totalorder %s26, 1
    %p316 = por %p314, %p315
    %p318 = scmp.ne.s32.totalorder %s301, %s317
    %p319 = scmp.eq.s32.totalorder %s26, 0
    %p320 = por %p318, %p319
    %s321 = ssub.s32 %s28, %s35
    %p322 = scmp.eq.s32.totalorder %s321, 0
    %s324 = sadd.s32 %s323, 1
    %s325 = scalar_select %p322, %s323, %s324
    %p328 = pneg %p322
    %p329 = scmp.eq.s32.totalorder %s20, 1
    %p330 = por %p328, %p329
    %p331 = scmp.ne.s32.totalorder %s323, %s326
    %p332 = scmp.eq.s32.totalorder %s20, 0
    %p333 = por %p331, %p332
    %p334 = scmp.ne.s32.totalorder %s323, %s326
    %p335 = scmp.eq.s32.totalorder %s25, 1
    %p336 = por %p334, %p335
    %p337 = scmp.ne.s32.totalorder %s326, %s327
    %p338 = scmp.eq.s32.totalorder %s25, 0
    %p339 = por %p337, %p338
    %p340 = scmp.ne.s32.totalorder %s326, %s327
    %p341 = scmp.eq.s32.totalorder %s26, 1
    %p342 = por %p340, %p341
    %p344 = scmp.ne.s32.totalorder %s327, %s343
    %p345 = scmp.eq.s32.totalorder %s26, 0
    %p346 = por %p344, %p345
    %s347 = ssub.s32 %s28, %s35
    %p348 = scmp.eq.s32.totalorder %s347, 0
    %s350 = sadd.s32 %s349, 1
    %s351 = scalar_select %p348, %s349, %s350
    %p354 = pneg %p348
    %p355 = scmp.eq.s32.totalorder %s20, 1
    %p356 = por %p354, %p355
    %p357 = scmp.ne.s32.totalorder %s349, %s352
    %p358 = scmp.eq.s32.totalorder %s20, 0
    %p359 = por %p357, %p358
    %p360 = scmp.ne.s32.totalorder %s349, %s352
    %p361 = scmp.eq.s32.totalorder %s25, 1
    %p362 = por %p360, %p361
    %p363 = scmp.ne.s32.totalorder %s352, %s353
    %p364 = scmp.eq.s32.totalorder %s25, 0
    %p365 = por %p363, %p364
    %p366 = scmp.ne.s32.totalorder %s352, %s353
    %p367 = scmp.eq.s32.totalorder %s26, 1
    %p368 = por %p366, %p367
    %p370 = scmp.ne.s32.totalorder %s353, %s369
    %p371 = scmp.eq.s32.totalorder %s26, 0
    %p372 = por %p370, %p371
    %s373 = ssub.s32 %s28, %s35
    %p374 = scmp.eq.s32.totalorder %s373, 0
    %s376 = sadd.s32 %s375, 1
    %s377 = scalar_select %p374, %s375, %s376
    %p380 = pneg %p374
    %p381 = scmp.eq.s32.totalorder %s20, 1
    %p382 = por %p380, %p381
    %p383 = scmp.ne.s32.totalorder %s375, %s378
    %p384 = scmp.eq.s32.totalorder %s20, 0
    %p385 = por %p383, %p384
    %p386 = scmp.ne.s32.totalorder %s375, %s378
    %p387 = scmp.eq.s32.totalorder %s25, 1
    %p388 = por %p386, %p387
    %p389 = scmp.ne.s32.totalorder %s378, %s379
    %p390 = scmp.eq.s32.totalorder %s25, 0
    %p391 = por %p389, %p390
    %p392 = scmp.ne.s32.totalorder %s378, %s379
    %p393 = scmp.eq.s32.totalorder %s26, 1
    %p394 = por %p392, %p393
    %p396 = scmp.ne.s32.totalorder %s379, %s395
    %p397 = scmp.eq.s32.totalorder %s26, 0
    %p398 = por %p396, %p397
    %s399 = ssub.s32 %s27, %s39
    %p400 = scmp.eq.s32.totalorder %s399, 0
    %s402 = sadd.s32 %s401, 1
    %s403 = scalar_select %p400, %s401, %s402
    %p406 = pneg %p400
    %p407 = scmp.eq.s32.totalorder %s20, 1
    %p408 = por %p406, %p407
    %p409 = scmp.ne.s32.totalorder %s401, %s404
    %p410 = scmp.eq.s32.totalorder %s20, 0
    %p411 = por %p409, %p410
    %p412 = scmp.ne.s32.totalorder %s401, %s404
    %p413 = scmp.eq.s32.totalorder %s25, 1
    %p414 = por %p412, %p413
    %p415 = scmp.ne.s32.totalorder %s404, %s405
    %p416 = scmp.eq.s32.totalorder %s25, 0
    %p417 = por %p415, %p416
    %p418 = scmp.ne.s32.totalorder %s404, %s405
    %p419 = scmp.eq.s32.totalorder %s26, 1
    %p420 = por %p418, %p419
    %p422 = scmp.ne.s32.totalorder %s405, %s421
    %p423 = scmp.eq.s32.totalorder %s26, 0
    %p424 = por %p422, %p423
    %p425 = scmp.le.s32.totalorder 1, %s20
    %p426 = scmp.lt.s32.totalorder %s20, 3
    %p427 = pnand %p425, %p426
    %p428 = pneg %p427
    // Predicated region
    $region9: #{frozen_clip_text_embedder_forward.2} parent=5 // pred_check
      _
    $region10: #{frozen_clip_text_embedder_forward.2} parent=5 // pred_check_branch
      %430 = sbr.rel (%p427) target = $region12
    $region11: #{frozen_clip_text_embedder_forward.2} parent=5 // pred_region
      %s431 = ssub.s32 %s20, 1
      // Predicated region
      $region13: #{frozen_clip_text_embedder_forward.2} parent=11 // pred_check
        %p432 = pneg %p58
      $region14: #{frozen_clip_text_embedder_forward.2} parent=11 // pred_check_branch
        %434 = sbr.rel (%p432) target = $region16
      $region15: #{frozen_clip_text_embedder_forward.2} parent=11 // pred_region
        %s435 = smul.u32 2, %s29
        %p436 = scmp.lt.s32.totalorder %s435, 1
        %s437 = scalar_select %p436, %s435, 1
        %s438 = smul.addr %s437, 8
        %s439 = scalar_lea.vmem %s0, %s438
        %s440 = smul.u32 2, %s29
      $region16: #{frozen_clip_text_embedder_forward.2} parent=11 // pred_fallthru
        _
      // Predicated region
      $region17: #{frozen_clip_text_embedder_forward.2} parent=11 // pred_check
        %p441 = pneg %p79
      $region18: #{frozen_clip_text_embedder_forward.2} parent=11 // pred_check_branch
        %443 = sbr.rel (%p441) target = $region20
      $region19: #{frozen_clip_text_embedder_forward.2} parent=11 // pred_region
        _
      $region20: #{frozen_clip_text_embedder_forward.2} parent=11 // pred_fallthru
        _
    $region12: #{frozen_clip_text_embedder_forward.2} parent=5 // pred_fallthru
      _
    %p444 = scmp.lt.s32.totalorder %s20, 2
    // Predicated region
    $region21: #{frozen_clip_text_embedder_forward.2} parent=5 // pred_check
      %p445 = pneg %p444
    $region22: #{frozen_clip_text_embedder_forward.2} parent=5 // pred_check_branch
      %447 = sbr.rel (%p445) target = $region24
    $region23: #{frozen_clip_text_embedder_forward.2} parent=5 // pred_region
      // Predicated region
      $region25: #{frozen_clip_text_embedder_forward.2} parent=23 // pred_check
        %p448 = pneg %p99
      $region26: #{frozen_clip_text_embedder_forward.2} parent=23 // pred_check_branch
        %450 = sbr.rel (%p448) target = $region28
      $region27: #{frozen_clip_text_embedder_forward.2} parent=23 // pred_region
        %p451 = scmp.lt.s32.totalorder %s28, 1
        %s452 = scalar_select %p451, %s28, 1
        %s453 = scalar_lea.vmem %s2, %s452
      $region28: #{frozen_clip_text_embedder_forward.2} parent=23 // pred_fallthru
        _
      // Predicated region
      $region29: #{frozen_clip_text_embedder_forward.2} parent=23 // pred_check
        %p454 = pneg %p125
      $region30: #{frozen_clip_text_embedder_forward.2} parent=23 // pred_check_branch
        %456 = sbr.rel (%p454) target = $region32
      $region31: #{frozen_clip_text_embedder_forward.2} parent=23 // pred_region
        %p457 = scmp.lt.s32.totalorder %s28, 1
        %s458 = scalar_select %p457, %s28, 1
        %s459 = scalar_lea.vmem %s3, %s458
      $region32: #{frozen_clip_text_embedder_forward.2} parent=23 // pred_fallthru
        _
      // Predicated region
      $region33: #{frozen_clip_text_embedder_forward.2} parent=23 // pred_check
        %p460 = pneg %p151
      $region34: #{frozen_clip_text_embedder_forward.2} parent=23 // pred_check_branch
        %462 = sbr.rel (%p460) target = $region36
      $region35: #{frozen_clip_text_embedder_forward.2} parent=23 // pred_region
        %p463 = scmp.lt.s32.totalorder %s28, 1
        %s464 = scalar_select %p463, %s28, 1
        %s465 = smul.addr %s464, 4
        %s466 = smul.addr %s465, 4
        %s467 = scalar_lea.vmem %s4, %s466
      $region36: #{frozen_clip_text_embedder_forward.2} parent=23 // pred_fallthru
        _
      // Predicated region
      $region37: #{frozen_clip_text_embedder_forward.2} parent=23 // pred_check
        %p468 = pneg %p177
      $region38: #{frozen_clip_text_embedder_forward.2} parent=23 // pred_check_branch
        %470 = sbr.rel (%p468) target = $region40
      $region39: #{frozen_clip_text_embedder_forward.2} parent=23 // pred_region
        %p471 = scmp.lt.s32.totalorder %s28, 1
        %s472 = scalar_select %p471, %s28, 1
        %s473 = scalar_lea.vmem %s5, %s472
      $region40: #{frozen_clip_text_embedder_forward.2} parent=23 // pred_fallthru
        _
      // Predicated region
      $region41: #{frozen_clip_text_embedder_forward.2} parent=23 // pred_check
        %p474 = pneg %p203
      $region42: #{frozen_clip_text_embedder_forward.2} parent=23 // pred_check_branch
        %476 = sbr.rel (%p474) target = $region44
      $region43: #{frozen_clip_text_embedder_forward.2} parent=23 // pred_region
        %p477 = scmp.lt.s32.totalorder %s28, 1
        %s478 = scalar_select %p477, %s28, 1
        %s479 = smul.addr %s478, 4
        %s480 = smul.addr %s479, 4
        %s481 = scalar_lea.vmem %s6, %s480
      $region44: #{frozen_clip_text_embedder_forward.2} parent=23 // pred_fallthru
        _
      // Predicated region
      $region45: #{frozen_clip_text_embedder_forward.2} parent=23 // pred_check
        %p482 = pneg %p229
      $region46: #{frozen_clip_text_embedder_forward.2} parent=23 // pred_check_branch
        %484 = sbr.rel (%p482) target = $region48
      $region47: #{frozen_clip_text_embedder_forward.2} parent=23 // pred_region
        %p485 = scmp.lt.s32.totalorder %s28, 1
        %s486 = scalar_select %p485, %s28, 1
        %s487 = scalar_lea.vmem %s7, %s486
      $region48: #{frozen_clip_text_embedder_forward.2} parent=23 // pred_fallthru
        _
      // Predicated region
      $region49: #{frozen_clip_text_embedder_forward.2} parent=23 // pred_check
        %p488 = pneg %p255
      $region50: #{frozen_clip_text_embedder_forward.2} parent=23 // pred_check_branch
        %490 = sbr.rel (%p488) target = $region52
      $region51: #{frozen_clip_text_embedder_forward.2} parent=23 // pred_region
        %p491 = scmp.lt.s32.totalorder %s28, 1
        %s492 = scalar_select %p491, %s28, 1
        %s493 = scalar_lea.vmem %s8, %s492
      $region52: #{frozen_clip_text_embedder_forward.2} parent=23 // pred_fallthru
        _
      // Predicated region
      $region53: #{frozen_clip_text_embedder_forward.2} parent=23 // pred_check
        %p494 = pneg %p281
      $region54: #{frozen_clip_text_embedder_forward.2} parent=23 // pred_check_branch
        %496 = sbr.rel (%p494) target = $region56
      $region55: #{frozen_clip_text_embedder_forward.2} parent=23 // pred_region
        %p497 = scmp.lt.s32.totalorder %s28, 1
        %s498 = scalar_select %p497, %s28, 1
        %s499 = scalar_lea.vmem %s9, %s498
      $region56: #{frozen_clip_text_embedder_forward.2} parent=23 // pred_fallthru
        _
      // Predicated region
      $region57: #{frozen_clip_text_embedder_forward.2} parent=23 // pred_check
        %p500 = pneg %p307
      $region58: #{frozen_clip_text_embedder_forward.2} parent=23 // pred_check_branch
        %502 = sbr.rel (%p500) target = $region60
      $region59: #{frozen_clip_text_embedder_forward.2} parent=23 // pred_region
        %p503 = scmp.lt.s32.totalorder %s28, 1
        %s504 = scalar_select %p503, %s28, 1
        %s505 = smul.addr %s504, 4
        %s506 = smul.addr %s505, 4
        %s507 = scalar_lea.vmem %s10, %s506
      $region60: #{frozen_clip_text_embedder_forward.2} parent=23 // pred_fallthru
        _
      // Predicated region
      $region61: #{frozen_clip_text_embedder_forward.2} parent=23 // pred_check
        %p508 = pneg %p333
      $region62: #{frozen_clip_text_embedder_forward.2} parent=23 // pred_check_branch
        %510 = sbr.rel (%p508) target = $region64
      $region63: #{frozen_clip_text_embedder_forward.2} parent=23 // pred_region
        %p511 = scmp.lt.s32.totalorder %s28, 1
        %s512 = scalar_select %p511, %s28, 1
        %s513 = scalar_lea.vmem %s11, %s512
      $region64: #{frozen_clip_text_embedder_forward.2} parent=23 // pred_fallthru
        _
      // Predicated region
      $region65: #{frozen_clip_text_embedder_forward.2} parent=23 // pred_check
        %p514 = pneg %p359
      $region66: #{frozen_clip_text_embedder_forward.2} parent=23 // pred_check_branch
        %516 = sbr.rel (%p514) target = $region68
      $region67: #{frozen_clip_text_embedder_forward.2} parent=23 // pred_region
        %p517 = scmp.lt.s32.totalorder %s28, 1
        %s518 = scalar_select %p517, %s28, 1
        %s519 = smul.addr %s518, 16
        %s520 = smul.addr %s519, 4
        %s521 = scalar_lea.vmem %s12, %s520
      $region68: #{frozen_clip_text_embedder_forward.2} parent=23 // pred_fallthru
        _
      // Predicated region
      $region69: #{frozen_clip_text_embedder_forward.2} parent=23 // pred_check
        %p522 = pneg %p385
      $region70: #{frozen_clip_text_embedder_forward.2} parent=23 // pred_check_branch
        %524 = sbr.rel (%p522) target = $region72
      $region71: #{frozen_clip_text_embedder_forward.2} parent=23 // pred_region
        %p525 = scmp.lt.s32.totalorder %s28, 1
        %s526 = scalar_select %p525, %s28, 1
        %s527 = scalar_lea.vmem %s13, %s526
      $region72: #{frozen_clip_text_embedder_forward.2} parent=23 // pred_fallthru
        _
    $region24: #{frozen_clip_text_embedder_forward.2} parent=5 // pred_fallthru
      _
    %p528 = scmp.le.s32.totalorder 1, %s20
    %p529 = scmp.lt.s32.totalorder %s20, 3
    %p530 = pnand %p528, %p529
    %p531 = pneg %p530
    // Predicated region
    $region73: #{frozen_clip_text_embedder_forward.2} parent=5 // pred_check
      _
    $region74: #{frozen_clip_text_embedder_forward.2} parent=5 // pred_check_branch
      %533 = sbr.rel (%p530) target = $region76
    $region75: #{frozen_clip_text_embedder_forward.2} parent=5 // pred_region
      %s534 = ssub.s32 %s20, 1
      %s535 = smul.u32 2, %s29
      %p536 = scmp.lt.s32.totalorder %s535, 1
      %s537 = scalar_select %p536, %s535, 1
      %s538 = smul.addr %s537, 8
      %s539 = scalar_lea.vmem %s0, %s538
      %p540 = pneg %p58
      %p541 = pneg %p55
      %p542 = pneg %p79
      %p543 = pneg %p76
      %p544 = scmp.lt.s32.totalorder %s30, 1
      %s545 = scalar_select %p544, %s30, 1
      %s546 = scalar_lea.vmem %s2, %s545
      %p547 = pneg %p105
      %p548 = pneg %p102
      %p549 = scmp.lt.s32.totalorder %s30, 1
      %s550 = scalar_select %p549, %s30, 1
      %s551 = scalar_lea.vmem %s3, %s550
      %p552 = pneg %p131
      %p553 = pneg %p128
      %p554 = scmp.lt.s32.totalorder %s30, 1
      %s555 = scalar_select %p554, %s30, 1
      %s556 = smul.addr %s555, 4
      %s557 = smul.addr %s556, 4
      %s558 = scalar_lea.vmem %s4, %s557
      %p559 = pneg %p157
      %p560 = pneg %p154
      %p561 = scmp.lt.s32.totalorder %s30, 1
      %s562 = scalar_select %p561, %s30, 1
      %s563 = scalar_lea.vmem %s5, %s562
      %p564 = pneg %p183
      %p565 = pneg %p180
      %p566 = scmp.lt.s32.totalorder %s30, 1
      %s567 = scalar_select %p566, %s30, 1
      %s568 = smul.addr %s567, 4
      %s569 = smul.addr %s568, 4
      %s570 = scalar_lea.vmem %s6, %s569
      %p571 = pneg %p209
      %p572 = pneg %p206
      %p573 = scmp.lt.s32.totalorder %s30, 1
      %s574 = scalar_select %p573, %s30, 1
      %s575 = scalar_lea.vmem %s7, %s574
      %p576 = pneg %p235
      %p577 = pneg %p232
      %p578 = scmp.lt.s32.totalorder %s30, 1
      %s579 = scalar_select %p578, %s30, 1
      %s580 = scalar_lea.vmem %s8, %s579
      %p581 = pneg %p261
      %p582 = pneg %p258
      %p583 = scmp.lt.s32.totalorder %s30, 1
      %s584 = scalar_select %p583, %s30, 1
      %s585 = scalar_lea.vmem %s9, %s584
      %p586 = pneg %p287
      %p587 = pneg %p284
      %p588 = scmp.lt.s32.totalorder %s30, 1
      %s589 = scalar_select %p588, %s30, 1
      %s590 = smul.addr %s589, 4
      %s591 = smul.addr %s590, 4
      %s592 = scalar_lea.vmem %s10, %s591
      %p593 = pneg %p313
      %p594 = pneg %p310
      %p595 = scmp.lt.s32.totalorder %s30, 1
      %s596 = scalar_select %p595, %s30, 1
      %s597 = scalar_lea.vmem %s11, %s596
      %p598 = pneg %p339
      %p599 = pneg %p336
      %p600 = scmp.lt.s32.totalorder %s30, 1
      %s601 = scalar_select %p600, %s30, 1
      %s602 = smul.addr %s601, 16
      %s603 = smul.addr %s602, 4
      %s604 = scalar_lea.vmem %s12, %s603
      %p605 = pneg %p365
      %p606 = pneg %p362
      %p607 = scmp.lt.s32.totalorder %s30, 1
      %s608 = scalar_select %p607, %s30, 1
      %s609 = scalar_lea.vmem %s13, %s608
      %p610 = pneg %p391
      %p611 = pneg %p388
      %p612 = pneg %p417
      %p613 = pneg %p414
      %s614 = smul.u32 2, %s29
      %p615 = scmp.lt.s32.totalorder %s614, 1
      %s616 = scalar_select %p615, %s614, 1
      %s617 = smul.addr %s616, 8
      %s618 = scalar_lea.vmem %s14, %s617
      %s619 = smul.u32 2, %s29
      %p620 = scmp.lt.s32.totalorder %s619, 1
      %s621 = scalar_select %p620, %s619, 1
      %s622 = smul.addr %s621, 8
      %s623 = scalar_lea.vmem %s0, %s622
      %s624 = smul.u32 2, %s29
      %p625 = scmp.lt.s32.totalorder %s30, 1
      %s626 = scalar_select %p625, %s30, 1
      %s627 = scalar_lea.vmem %s2, %s626
      %p628 = scmp.lt.s32.totalorder %s30, 1
      %s629 = scalar_select %p628, %s30, 1
      %s630 = scalar_lea.vmem %s3, %s629
      %p631 = scmp.lt.s32.totalorder %s30, 1
      %s632 = scalar_select %p631, %s30, 1
      %s633 = smul.addr %s632, 4
      %s634 = smul.addr %s633, 4
      %s635 = scalar_lea.vmem %s4, %s634
      %p636 = scmp.lt.s32.totalorder %s30, 1
      %s637 = scalar_select %p636, %s30, 1
      %s638 = scalar_lea.vmem %s5, %s637
      %p639 = scmp.lt.s32.totalorder %s30, 1
      %s640 = scalar_select %p639, %s30, 1
      %s641 = smul.addr %s640, 4
      %s642 = smul.addr %s641, 4
      %s643 = scalar_lea.vmem %s6, %s642
      %p644 = scmp.lt.s32.totalorder %s30, 1
      %s645 = scalar_select %p644, %s30, 1
      %s646 = scalar_lea.vmem %s7, %s645
      %p647 = scmp.lt.s32.totalorder %s30, 1
      %s648 = scalar_select %p647, %s30, 1
      %s649 = scalar_lea.vmem %s8, %s648
      %p650 = scmp.lt.s32.totalorder %s30, 1
      %s651 = scalar_select %p650, %s30, 1
      %s652 = scalar_lea.vmem %s9, %s651
      %p653 = scmp.lt.s32.totalorder %s30, 1
      %s654 = scalar_select %p653, %s30, 1
      %s655 = smul.addr %s654, 4
      %s656 = smul.addr %s655, 4
      %s657 = scalar_lea.vmem %s10, %s656
      %p658 = scmp.lt.s32.totalorder %s30, 1
      %s659 = scalar_select %p658, %s30, 1
      %s660 = scalar_lea.vmem %s11, %s659
      %p661 = scmp.lt.s32.totalorder %s30, 1
      %s662 = scalar_select %p661, %s30, 1
      %s663 = smul.addr %s662, 16
      %s664 = smul.addr %s663, 4
      %s665 = scalar_lea.vmem %s12, %s664
      %p666 = scmp.lt.s32.totalorder %s30, 1
      %s667 = scalar_select %p666, %s30, 1
      %s668 = scalar_lea.vmem %s13, %s667
      %s669 = smul.u32 2, %s29
      %p670 = scmp.lt.s32.totalorder %s669, 1
      %s671 = scalar_select %p670, %s669, 1
      %s672 = smul.addr %s671, 8
      %s673 = scalar_lea.vmem %s14, %s672
      %s674 = smul.u32 2, %s29
      %p676 = scmp.eq.s32.totalorder %s30, 0
      // Predicated region
      $region77: #{frozen_clip_text_embedder_forward.2} parent=75 // pred_check
        %p677 = pneg %p676
      $region78: #{frozen_clip_text_embedder_forward.2} parent=75 // pred_check_branch
        %679 = sbr.rel (%p677) target = $region80
      $region79: #{frozen_clip_text_embedder_forward.2} parent=75 // pred_region
        %v680 = vld [vmem:[%s623] sm:$0xff]
        %v681 = vld [vmem:[%s623 + $0x8] sm:$0xff]
        %vm682 = vcmask 261120
        %683 = vst.msk [vmem:[%s673] sm:$0xff] %vm682, %v680
        %684 = vst.msk [vmem:[%s673 + $0x8] sm:$0xff] %vm682, %v681
      $region80: #{frozen_clip_text_embedder_forward.2} parent=75 // pred_fallthru
        _
      %v685 = vld [vmem:[%s1] sm:$0xff]
      %v686 = vld [vmem:[%s673] sm:$0xff]
      %v687 = vld [vmem:[%s673 + $0x8] sm:$0xff]
      %v688 = vld [vmem:[%s627] sm:$0x1]
      %v689 = vld [vmem:[%s630] sm:$0x1]
      %vm690 = vcmask 261120
      %v691 = vsel %vm690, %v686, 0.0
      %692 = vadd.xlane.f32.xlu0 %v691
      %v693 = vpop.xlane.xlu0 %692
      %v694 = vsel %vm690, %v687, 0.0
      %695 = vadd.xlane.f32.xlu0 %v694
      %v696 = vpop.xlane.xlu0 %695
      %v697 = vrcp.pop 32.0
      %v698 = vmul.f32 32.0, %v697
      %v699 = vsub.f32 1.0, %v698
      %v700 = vmul.f32 %v697, %v699
      %v701 = vadd.f32 %v697, %v700
      %vm702 = vweird.f32 %v697
      %v703 = vsel %vm702, %v697, %v701
      %v704 = vmul.f32 %v693, %v703
      %v705 = vmul.f32 %v696, %v703
      %v706 = vsub.f32 %v686, %v704
      %v707 = vsub.f32 %v687, %v705
      %v708 = vmul.f32 %v706, %v706
      %v709 = vmul.f32 %v707, %v707
      %v710 = vsel %vm690, %v708, 0.0
      %711 = vadd.xlane.f32.xlu0 %v710
      %v712 = vpop.xlane.xlu0 %711
      %v713 = vsel %vm690, %v709, 0.0
      %714 = vadd.xlane.f32.xlu0 %v713
      %v715 = vpop.xlane.xlu0 %714
      %v716 = vmul.f32 %v712, %v703
      %v717 = vmul.f32 %v715, %v703
      %v718 = vadd.f32 %v716, 1e-05
      %v719 = vadd.f32 %v717, 1e-05
      %v720 = vrsqrt.pop %v718
      %v721 = vmul.f32 %v720, %v718
      %v722 = vmul.f32 %v721, %v720
      %v723 = vmul.f32 0.5, %v722
      %v724 = vsub.f32 1.5, %v723
      %v725 = vmul.f32 %v720, %v724
      %vm726 = vweird.f32 %v718
      %vm727 = vweird.f32 %v720
      %vm728 = vmor %vm726, %vm727
      %v729 = vsel %vm728, %v720, %v725
      %v730 = vrsqrt.pop %v719
      %v731 = vmul.f32 %v730, %v719
      %v732 = vmul.f32 %v731, %v730
      %v733 = vmul.f32 0.5, %v732
      %v734 = vsub.f32 1.5, %v733
      %v735 = vmul.f32 %v730, %v734
      %vm736 = vweird.f32 %v719
      %vm737 = vweird.f32 %v730
      %vm738 = vmor %vm736, %vm737
      %v739 = vsel %vm738, %v730, %v735
      %v740 = vmul.f32 %v706, %v729
      %v741 = vmul.f32 %v707, %v739
      %v743 = vperm.slane %v688, 0
      %v745 = vmul.f32 %v740, %v743
      %v746 = vmul.f32 %v741, %v743
      %v748 = vperm.slane %v689, 0
      %v750 = vadd.f32 %v745, %v748
      %v751 = vadd.f32 %v746, %v748
      %v752 = vpack.c.bf16 %v751, %v750
      %v753 = vld [vmem:[%s635] sm:$0xf]
      %v754 = vld [vmem:[%s635 + $0x4] sm:$0xf]
      %v755 = vld [vmem:[%s635 + $0x8] sm:$0xf]
      %v756 = vld [vmem:[%s635 + $0xc] sm:$0xf]
      %v757 = vld [vmem:[%s638] sm:$0x1]
      %v759 = vperm.slane %v757, 0
      %v765 = vunpack.c.l.b16 %v753
      %v766 = vunpack.c.l.b16 %v754
      %v767 = vunpack.c.l.b16 %v755
      %v768 = vunpack.c.l.b16 %v756
      %v769 = vpack.c.b16 %v766, %v765
      %v770 = vpack.c.b16 %v768, %v767
      %v774 = vsel %vm690, %v752, 0
      %776 = vmatpush.bf16.msra.mxu0 0
      %777 = vmatpush.bf16.msra.mxu0 0
      %778 = vmatpush.bf16.msra.mxu0 0
      %779 = vmatpush.bf16.msra.mxu0 0
      %780 = vmatpush.bf16.msra.mxu0 0
      %781 = vmatpush.bf16.msra.mxu0 0
      %782 = vmatpush.bf16.msra.mxu0 %v770
      %783 = vmatpush.bf16.msra.mxu0 %v769
      %784 = vmatmul.bf16.gmra.mxu0 %v774
      %v785 = vpop.f32.mrf.mxu0
      %v786 = vadd.f32 %v759, %v785
      %v787 = vpop.f32.mrf.mxu0
      %v788 = vadd.f32 %v759, %v787
      %789 = vdwg.mxu0
      %vm790 = vcmask 785408
      %791 = vst.msk [vmem:[#allocation2] sm:$0xff] %vm790, %v786
      %792 = vst.msk [vmem:[#allocation2 + $0x8] sm:$0xff] %vm790, %v788
      %v793 = vld [vmem:[#allocation2] sm:$0xff]
      %v794 = vld [vmem:[#allocation2 + $0x8] sm:$0xff]
      %v795 = vpack.c.bf16 %v793, %v793
      %v796 = vpack.c.bf16 %v794, %v794
      %v798 = vunpack.c.l.b16 %v795
      %v799 = vpack.c.b16 %v798, %v798
      %800 = vrot.lane.b32.xlu0 %v799, 96
      %v801 = vpop.permute.xlu0 %800
      %vm802 = vcmask 64512
      %v804 = vsel %vm802, %v795, 0
      %v807 = vsel %vm802, %v801, 0
      %809 = vmatpush.bf16.xpose.msra.mxu0 0
      %810 = vmatpush.bf16.xpose.msra.mxu0 0
      %811 = vmatpush.bf16.xpose.msra.mxu0 0
      %812 = vmatpush.bf16.xpose.msra.mxu0 0
      %813 = vmatpush.bf16.xpose.msra.mxu0 0
      %814 = vmatpush.bf16.xpose.msra.mxu0 0
      %815 = vmatpush.bf16.xpose.msra.mxu0 0
      %816 = vmatpush.bf16.xpose.msra.mxu0 %v807
      %817 = vmatmul.bf16.gmra.mxu0 %v804
      %v818 = vpop.f32.mrf.mxu0
      %v819 = vadd.f32 %v685, %v818
      %v820 = vpop.f32.mrf.mxu0
      %821 = vdwg.mxu0
      %v823 = vunpack.c.l.b16 %v796
      %v824 = vpack.c.b16 %v823, %v823
      %825 = vrot.lane.b32.xlu0 %v824, 96
      %v826 = vpop.permute.xlu0 %825
      %v828 = vsel %vm802, %v796, 0
      %v831 = vsel %vm802, %v826, 0
      %833 = vmatpush.bf16.xpose.msra.mxu0 0
      %834 = vmatpush.bf16.xpose.msra.mxu0 0
      %835 = vmatpush.bf16.xpose.msra.mxu0 0
      %836 = vmatpush.bf16.xpose.msra.mxu0 0
      %837 = vmatpush.bf16.xpose.msra.mxu0 0
      %838 = vmatpush.bf16.xpose.msra.mxu0 0
      %839 = vmatpush.bf16.xpose.msra.mxu0 0
      %840 = vmatpush.bf16.xpose.msra.mxu0 %v831
      %841 = vmatmul.bf16.gmra.mxu0 %v828
      %v842 = vpop.f32.mrf.mxu0
      %v843 = vadd.f32 %v685, %v842
      %v844 = vpop.f32.mrf.mxu0
      %845 = vdwg.mxu0
      %v846 = vsel %vm802, %v819, -inf
      %847 = vmax.xlane.f32.xlu0 %v846
      %v848 = vpop.xlane.xlu0 %847
      %v849 = vsel %vm802, %v843, -inf
      %850 = vmax.xlane.f32.xlu0 %v849
      %v851 = vpop.xlane.xlu0 %850
      %v852 = vsub.f32 %v819, %v848
      %v853 = vsub.f32 %v843, %v851
      %v854 = vmul.f32 %v852, 1.442695
      %v855 = vpow.pop %v854
      %v856 = vmul.f32 %v853, 1.442695
      %v857 = vpow.pop %v856
      %v858 = vsel %vm802, %v855, 0.0
      %859 = vadd.xlane.f32.xlu0 %v858
      %v860 = vpop.xlane.xlu0 %859
      %v861 = vsel %vm802, %v857, 0.0
      %862 = vadd.xlane.f32.xlu0 %v861
      %v863 = vpop.xlane.xlu0 %862
      %v864 = vrcp.pop %v860
      %v865 = vrcp.pop %v863
      %v866 = vmul.f32 %v855, %v864
      %v867 = vmul.f32 %v857, %v865
      %v868 = vpack.c.bf16 %v866, %v866
      %v869 = vpack.c.bf16 %v867, %v867
      %870 = vrot.lane.b32.xlu0 %v799, 64
      %v871 = vpop.permute.xlu0 %870
      %v873 = vsel %vm802, %v868, 0
      %vm875 = vcmask 1043456
      %v877 = vsel %vm875, %v871, 0
      %879 = vmatpush.bf16.msra.mxu0 0
      %880 = vmatpush.bf16.msra.mxu0 0
      %881 = vmatpush.bf16.msra.mxu0 0
      %882 = vmatpush.bf16.msra.mxu0 0
      %883 = vmatpush.bf16.msra.mxu0 0
      %884 = vmatpush.bf16.msra.mxu0 0
      %885 = vmatpush.bf16.msra.mxu0 0
      %886 = vmatpush.bf16.msra.mxu0 %v877
      %887 = vmatmul.bf16.gmra.mxu0 %v873
      %v888 = vpop.f32.mrf.mxu0
      %v889 = vadd.f32 0.0, %v888
      %v890 = vpop.f32.mrf.mxu0
      %891 = vdwg.mxu0
      %892 = vrot.lane.b32.xlu0 %v824, 64
      %v893 = vpop.permute.xlu0 %892
      %v895 = vsel %vm802, %v869, 0
      %v898 = vsel %vm875, %v893, 0
      %900 = vmatpush.bf16.msra.mxu0 0
      %901 = vmatpush.bf16.msra.mxu0 0
      %902 = vmatpush.bf16.msra.mxu0 0
      %903 = vmatpush.bf16.msra.mxu0 0
      %904 = vmatpush.bf16.msra.mxu0 0
      %905 = vmatpush.bf16.msra.mxu0 0
      %906 = vmatpush.bf16.msra.mxu0 0
      %907 = vmatpush.bf16.msra.mxu0 %v898
      %908 = vmatmul.bf16.gmra.mxu0 %v895
      %v909 = vpop.f32.mrf.mxu0
      %v910 = vadd.f32 0.0, %v909
      %v911 = vpop.f32.mrf.mxu0
      %912 = vdwg.mxu0
      %913 = vst.msk [vmem:[#allocation2] sm:$0xff] %vm802, %v889
      %914 = vst.msk [vmem:[#allocation2 + $0x8] sm:$0xff] %vm802, %v910
      %v915 = vld [vmem:[#allocation2] sm:$0xff]
      %v916 = vld [vmem:[#allocation2 + $0x8] sm:$0xff]
      %v917 = vpack.c.bf16 %v915, %v915
      %v918 = vpack.c.bf16 %v916, %v916
      %v920 = vunpack.c.l.b16 %v917
      %v921 = vpack.c.b16 %v920, %v920
      %922 = vrot.lane.b32.xlu0 %v921, 120
      %v923 = vpop.permute.xlu0 %922
      %924 = vrot.lane.b32.xlu0 %v921, 88
      %v925 = vpop.permute.xlu0 %924
      %v927 = vsel %vm802, %v923, 0
      %v930 = vsel %vm802, %v925, 0
      %932 = vmatpush.bf16.xpose.msra.mxu0 0
      %933 = vmatpush.bf16.xpose.msra.mxu0 0
      %934 = vmatpush.bf16.xpose.msra.mxu0 0
      %935 = vmatpush.bf16.xpose.msra.mxu0 0
      %936 = vmatpush.bf16.xpose.msra.mxu0 0
      %937 = vmatpush.bf16.xpose.msra.mxu0 0
      %938 = vmatpush.bf16.xpose.msra.mxu0 0
      %939 = vmatpush.bf16.xpose.msra.mxu0 %v930
      %940 = vmatmul.bf16.gmra.mxu0 %v927
      %v941 = vpop.f32.mrf.mxu0
      %v942 = vadd.f32 %v685, %v941
      %v943 = vpop.f32.mrf.mxu0
      %944 = vdwg.mxu0
      %v946 = vunpack.c.l.b16 %v918
      %v947 = vpack.c.b16 %v946, %v946
      %948 = vrot.lane.b32.xlu0 %v947, 120
      %v949 = vpop.permute.xlu0 %948
      %950 = vrot.lane.b32.xlu0 %v947, 88
      %v951 = vpop.permute.xlu0 %950
      %v953 = vsel %vm802, %v949, 0
      %v956 = vsel %vm802, %v951, 0
      %958 = vmatpush.bf16.xpose.msra.mxu0 0
      %959 = vmatpush.bf16.xpose.msra.mxu0 0
      %960 = vmatpush.bf16.xpose.msra.mxu0 0
      %961 = vmatpush.bf16.xpose.msra.mxu0 0
      %962 = vmatpush.bf16.xpose.msra.mxu0 0
      %963 = vmatpush.bf16.xpose.msra.mxu0 0
      %964 = vmatpush.bf16.xpose.msra.mxu0 0
      %965 = vmatpush.bf16.xpose.msra.mxu0 %v956
      %966 = vmatmul.bf16.gmra.mxu0 %v953
      %v967 = vpop.f32.mrf.mxu0
      %v968 = vadd.f32 %v685, %v967
      %v969 = vpop.f32.mrf.mxu0
      %970 = vdwg.mxu0
      %v971 = vsel %vm802, %v942, -inf
      %972 = vmax.xlane.f32.xlu0 %v971
      %v973 = vpop.xlane.xlu0 %972
      %v974 = vsel %vm802, %v968, -inf
      %975 = vmax.xlane.f32.xlu0 %v974
      %v976 = vpop.xlane.xlu0 %975
      %v977 = vsub.f32 %v942, %v973
      %v978 = vsub.f32 %v968, %v976
      %v979 = vmul.f32 %v977, 1.442695
      %v980 = vpow.pop %v979
      %v981 = vmul.f32 %v978, 1.442695
      %v982 = vpow.pop %v981
      %v983 = vsel %vm802, %v980, 0.0
      %984 = vadd.xlane.f32.xlu0 %v983
      %v985 = vpop.xlane.xlu0 %984
      %v986 = vsel %vm802, %v982, 0.0
      %987 = vadd.xlane.f32.xlu0 %v986
      %v988 = vpop.xlane.xlu0 %987
      %v989 = vrcp.pop %v985
      %v990 = vrcp.pop %v988
      %v991 = vmul.f32 %v980, %v989
      %v992 = vmul.f32 %v982, %v990
      %v993 = vpack.c.bf16 %v991, %v991
      %v994 = vpack.c.bf16 %v992, %v992
      %995 = vrot.lane.b32.xlu0 %v921, 56
      %v996 = vpop.permute.xlu0 %995
      %v998 = vsel %vm802, %v993, 0
      %v1001 = vsel %vm875, %v996, 0
      %1003 = vmatpush.bf16.msra.mxu0 0
      %1004 = vmatpush.bf16.msra.mxu0 0
      %1005 = vmatpush.bf16.msra.mxu0 0
      %1006 = vmatpush.bf16.msra.mxu0 0
      %1007 = vmatpush.bf16.msra.mxu0 0
      %1008 = vmatpush.bf16.msra.mxu0 0
      %1009 = vmatpush.bf16.msra.mxu0 0
      %1010 = vmatpush.bf16.msra.mxu0 %v1001
      %1011 = vmatmul.bf16.gmra.mxu0 %v998
      %v1012 = vpop.f32.mrf.mxu0
      %v1013 = vadd.f32 0.0, %v1012
      %v1014 = vpop.f32.mrf.mxu0
      %1015 = vdwg.mxu0
      %1016 = vrot.lane.b32.xlu0 %v947, 56
      %v1017 = vpop.permute.xlu0 %1016
      %v1019 = vsel %vm802, %v994, 0
      %v1022 = vsel %vm875, %v1017, 0
      %1024 = vmatpush.bf16.msra.mxu0 0
      %1025 = vmatpush.bf16.msra.mxu0 0
      %1026 = vmatpush.bf16.msra.mxu0 0
      %1027 = vmatpush.bf16.msra.mxu0 0
      %1028 = vmatpush.bf16.msra.mxu0 0
      %1029 = vmatpush.bf16.msra.mxu0 0
      %1030 = vmatpush.bf16.msra.mxu0 0
      %1031 = vmatpush.bf16.msra.mxu0 %v1022
      %1032 = vmatmul.bf16.gmra.mxu0 %v1019
      %v1033 = vpop.f32.mrf.mxu0
      %v1034 = vadd.f32 0.0, %v1033
      %v1035 = vpop.f32.mrf.mxu0
      %1036 = vdwg.mxu0
      %1039 = vrot.lane.b32.xlu0 %v1013, 8
      %v1040 = vpop.permute.xlu0 %1039
      %1041 = vrot.lane.b32.xlu0 %v1034, 8
      %v1042 = vpop.permute.xlu0 %1041
      %vm1045 = vcmask 130112
      %1046 = vst.msk [vmem:[#allocation2] sm:$0xff] %vm1045, %v1040
      %1047 = vst.msk [vmem:[#allocation2 + $0x8] sm:$0xff] %vm1045, %v1042
      %v1048 = vld [vmem:[#allocation2] sm:$0xff]
      %v1049 = vld [vmem:[#allocation2 + $0x8] sm:$0xff]
      %v1050 = vpack.c.bf16 %v1048, %v1048
      %v1051 = vpack.c.bf16 %v1049, %v1049
      %v1053 = vunpack.c.l.b16 %v1050
      %v1054 = vpack.c.b16 %v1053, %v1053
      %1055 = vrot.lane.b32.xlu0 %v1054, 112
      %v1056 = vpop.permute.xlu0 %1055
      %1057 = vrot.lane.b32.xlu0 %v1054, 80
      %v1058 = vpop.permute.xlu0 %1057
      %v1060 = vsel %vm802, %v1056, 0
      %v1063 = vsel %vm802, %v1058, 0
      %1065 = vmatpush.bf16.xpose.msra.mxu0 0
      %1066 = vmatpush.bf16.xpose.msra.mxu0 0
      %1067 = vmatpush.bf16.xpose.msra.mxu0 0
      %1068 = vmatpush.bf16.xpose.msra.mxu0 0
      %1069 = vmatpush.bf16.xpose.msra.mxu0 0
      %1070 = vmatpush.bf16.xpose.msra.mxu0 0
      %1071 = vmatpush.bf16.xpose.msra.mxu0 0
      %1072 = vmatpush.bf16.xpose.msra.mxu0 %v1063
      %1073 = vmatmul.bf16.gmra.mxu0 %v1060
      %v1074 = vpop.f32.mrf.mxu0
      %v1075 = vadd.f32 %v685, %v1074
      %v1076 = vpop.f32.mrf.mxu0
      %1077 = vdwg.mxu0
      %v1079 = vunpack.c.l.b16 %v1051
      %v1080 = vpack.c.b16 %v1079, %v1079
      %1081 = vrot.lane.b32.xlu0 %v1080, 112
      %v1082 = vpop.permute.xlu0 %1081
      %1083 = vrot.lane.b32.xlu0 %v1080, 80
      %v1084 = vpop.permute.xlu0 %1083
      %v1086 = vsel %vm802, %v1082, 0
      %v1089 = vsel %vm802, %v1084, 0
      %1091 = vmatpush.bf16.xpose.msra.mxu0 0
      %1092 = vmatpush.bf16.xpose.msra.mxu0 0
      %1093 = vmatpush.bf16.xpose.msra.mxu0 0
      %1094 = vmatpush.bf16.xpose.msra.mxu0 0
      %1095 = vmatpush.bf16.xpose.msra.mxu0 0
      %1096 = vmatpush.bf16.xpose.msra.mxu0 0
      %1097 = vmatpush.bf16.xpose.msra.mxu0 0
      %1098 = vmatpush.bf16.xpose.msra.mxu0 %v1089
      %1099 = vmatmul.bf16.gmra.mxu0 %v1086
      %v1100 = vpop.f32.mrf.mxu0
      %v1101 = vadd.f32 %v685, %v1100
      %v1102 = vpop.f32.mrf.mxu0
      %1103 = vdwg.mxu0
      %v1104 = vsel %vm802, %v1075, -inf
      %1105 = vmax.xlane.f32.xlu0 %v1104
      %v1106 = vpop.xlane.xlu0 %1105
      %v1107 = vsel %vm802, %v1101, -inf
      %1108 = vmax.xlane.f32.xlu0 %v1107
      %v1109 = vpop.xlane.xlu0 %1108
      %v1110 = vsub.f32 %v1075, %v1106
      %v1111 = vsub.f32 %v1101, %v1109
      %v1112 = vmul.f32 %v1110, 1.442695
      %v1113 = vpow.pop %v1112
      %v1114 = vmul.f32 %v1111, 1.442695
      %v1115 = vpow.pop %v1114
      %v1116 = vsel %vm802, %v1113, 0.0
      %1117 = vadd.xlane.f32.xlu0 %v1116
      %v1118 = vpop.xlane.xlu0 %1117
      %v1119 = vsel %vm802, %v1115, 0.0
      %1120 = vadd.xlane.f32.xlu0 %v1119
      %v1121 = vpop.xlane.xlu0 %1120
      %v1122 = vrcp.pop %v1118
      %v1123 = vrcp.pop %v1121
      %v1124 = vmul.f32 %v1113, %v1122
      %v1125 = vmul.f32 %v1115, %v1123
      %v1126 = vpack.c.bf16 %v1124, %v1124
      %v1127 = vpack.c.bf16 %v1125, %v1125
      %1128 = vrot.lane.b32.xlu0 %v1054, 48
      %v1129 = vpop.permute.xlu0 %1128
      %v1131 = vsel %vm802, %v1126, 0
      %v1134 = vsel %vm875, %v1129, 0
      %1136 = vmatpush.bf16.msra.mxu0 0
      %1137 = vmatpush.bf16.msra.mxu0 0
      %1138 = vmatpush.bf16.msra.mxu0 0
      %1139 = vmatpush.bf16.msra.mxu0 0
      %1140 = vmatpush.bf16.msra.mxu0 0
      %1141 = vmatpush.bf16.msra.mxu0 0
      %1142 = vmatpush.bf16.msra.mxu0 0
      %1143 = vmatpush.bf16.msra.mxu0 %v1134
      %1144 = vmatmul.bf16.gmra.mxu0 %v1131
      %v1145 = vpop.f32.mrf.mxu0
      %v1146 = vadd.f32 0.0, %v1145
      %v1147 = vpop.f32.mrf.mxu0
      %1148 = vdwg.mxu0
      %1149 = vrot.lane.b32.xlu0 %v1080, 48
      %v1150 = vpop.permute.xlu0 %1149
      %v1152 = vsel %vm802, %v1127, 0
      %v1155 = vsel %vm875, %v1150, 0
      %1157 = vmatpush.bf16.msra.mxu0 0
      %1158 = vmatpush.bf16.msra.mxu0 0
      %1159 = vmatpush.bf16.msra.mxu0 0
      %1160 = vmatpush.bf16.msra.mxu0 0
      %1161 = vmatpush.bf16.msra.mxu0 0
      %1162 = vmatpush.bf16.msra.mxu0 0
      %1163 = vmatpush.bf16.msra.mxu0 0
      %1164 = vmatpush.bf16.msra.mxu0 %v1155
      %1165 = vmatmul.bf16.gmra.mxu0 %v1152
      %v1166 = vpop.f32.mrf.mxu0
      %v1167 = vadd.f32 0.0, %v1166
      %v1168 = vpop.f32.mrf.mxu0
      %1169 = vdwg.mxu0
      %1172 = vrot.lane.b32.xlu0 %v1146, 16
      %v1173 = vpop.permute.xlu0 %1172
      %1174 = vrot.lane.b32.xlu0 %v1167, 16
      %v1175 = vpop.permute.xlu0 %1174
      %vm1178 = vcmask 195712
      %1179 = vst.msk [vmem:[#allocation2] sm:$0xff] %vm1178, %v1173
      %1180 = vst.msk [vmem:[#allocation2 + $0x8] sm:$0xff] %vm1178, %v1175
      %v1181 = vld [vmem:[#allocation2] sm:$0xff]
      %v1182 = vld [vmem:[#allocation2 + $0x8] sm:$0xff]
      %v1183 = vpack.c.bf16 %v1181, %v1181
      %v1184 = vpack.c.bf16 %v1182, %v1182
      %v1186 = vunpack.c.l.b16 %v1183
      %v1187 = vpack.c.b16 %v1186, %v1186
      %1188 = vrot.lane.b32.xlu0 %v1187, 104
      %v1189 = vpop.permute.xlu0 %1188
      %1190 = vrot.lane.b32.xlu0 %v1187, 72
      %v1191 = vpop.permute.xlu0 %1190
      %v1193 = vsel %vm802, %v1189, 0
      %v1196 = vsel %vm802, %v1191, 0
      %1198 = vmatpush.bf16.xpose.msra.mxu0 0
      %1199 = vmatpush.bf16.xpose.msra.mxu0 0
      %1200 = vmatpush.bf16.xpose.msra.mxu0 0
      %1201 = vmatpush.bf16.xpose.msra.mxu0 0
      %1202 = vmatpush.bf16.xpose.msra.mxu0 0
      %1203 = vmatpush.bf16.xpose.msra.mxu0 0
      %1204 = vmatpush.bf16.xpose.msra.mxu0 0
      %1205 = vmatpush.bf16.xpose.msra.mxu0 %v1196
      %1206 = vmatmul.bf16.gmra.mxu0 %v1193
      %v1207 = vpop.f32.mrf.mxu0
      %v1208 = vadd.f32 %v685, %v1207
      %v1209 = vpop.f32.mrf.mxu0
      %1210 = vdwg.mxu0
      %v1212 = vunpack.c.l.b16 %v1184
      %v1213 = vpack.c.b16 %v1212, %v1212
      %1214 = vrot.lane.b32.xlu0 %v1213, 104
      %v1215 = vpop.permute.xlu0 %1214
      %1216 = vrot.lane.b32.xlu0 %v1213, 72
      %v1217 = vpop.permute.xlu0 %1216
      %v1219 = vsel %vm802, %v1215, 0
      %v1222 = vsel %vm802, %v1217, 0
      %1224 = vmatpush.bf16.xpose.msra.mxu0 0
      %1225 = vmatpush.bf16.xpose.msra.mxu0 0
      %1226 = vmatpush.bf16.xpose.msra.mxu0 0
      %1227 = vmatpush.bf16.xpose.msra.mxu0 0
      %1228 = vmatpush.bf16.xpose.msra.mxu0 0
      %1229 = vmatpush.bf16.xpose.msra.mxu0 0
      %1230 = vmatpush.bf16.xpose.msra.mxu0 0
      %1231 = vmatpush.bf16.xpose.msra.mxu0 %v1222
      %1232 = vmatmul.bf16.gmra.mxu0 %v1219
      %v1233 = vpop.f32.mrf.mxu0
      %v1234 = vadd.f32 %v685, %v1233
      %v1235 = vpop.f32.mrf.mxu0
      %1236 = vdwg.mxu0
      %v1237 = vsel %vm802, %v1208, -inf
      %1238 = vmax.xlane.f32.xlu0 %v1237
      %v1239 = vpop.xlane.xlu0 %1238
      %v1240 = vsel %vm802, %v1234, -inf
      %1241 = vmax.xlane.f32.xlu0 %v1240
      %v1242 = vpop.xlane.xlu0 %1241
      %v1243 = vsub.f32 %v1208, %v1239
      %v1244 = vsub.f32 %v1234, %v1242
      %v1245 = vmul.f32 %v1243, 1.442695
      %v1246 = vpow.pop %v1245
      %v1247 = vmul.f32 %v1244, 1.442695
      %v1248 = vpow.pop %v1247
      %v1249 = vsel %vm802, %v1246, 0.0
      %1250 = vadd.xlane.f32.xlu0 %v1249
      %v1251 = vpop.xlane.xlu0 %1250
      %v1252 = vsel %vm802, %v1248, 0.0
      %1253 = vadd.xlane.f32.xlu0 %v1252
      %v1254 = vpop.xlane.xlu0 %1253
      %v1255 = vrcp.pop %v1251
      %v1256 = vrcp.pop %v1254
      %v1257 = vmul.f32 %v1246, %v1255
      %v1258 = vmul.f32 %v1248, %v1256
      %v1259 = vpack.c.bf16 %v1257, %v1257
      %v1260 = vpack.c.bf16 %v1258, %v1258
      %1261 = vrot.lane.b32.xlu0 %v1187, 40
      %v1262 = vpop.permute.xlu0 %1261
      %v1264 = vsel %vm802, %v1259, 0
      %v1267 = vsel %vm875, %v1262, 0
      %1269 = vmatpush.bf16.msra.mxu0 0
      %1270 = vmatpush.bf16.msra.mxu0 0
      %1271 = vmatpush.bf16.msra.mxu0 0
      %1272 = vmatpush.bf16.msra.mxu0 0
      %1273 = vmatpush.bf16.msra.mxu0 0
      %1274 = vmatpush.bf16.msra.mxu0 0
      %1275 = vmatpush.bf16.msra.mxu0 0
      %1276 = vmatpush.bf16.msra.mxu0 %v1267
      %1277 = vmatmul.bf16.gmra.mxu0 %v1264
      %v1278 = vpop.f32.mrf.mxu0
      %v1279 = vadd.f32 0.0, %v1278
      %v1280 = vpop.f32.mrf.mxu0
      %1281 = vdwg.mxu0
      %1282 = vrot.lane.b32.xlu0 %v1213, 40
      %v1283 = vpop.permute.xlu0 %1282
      %v1285 = vsel %vm802, %v1260, 0
      %v1288 = vsel %vm875, %v1283, 0
      %1290 = vmatpush.bf16.msra.mxu0 0
      %1291 = vmatpush.bf16.msra.mxu0 0
      %1292 = vmatpush.bf16.msra.mxu0 0
      %1293 = vmatpush.bf16.msra.mxu0 0
      %1294 = vmatpush.bf16.msra.mxu0 0
      %1295 = vmatpush.bf16.msra.mxu0 0
      %1296 = vmatpush.bf16.msra.mxu0 0
      %1297 = vmatpush.bf16.msra.mxu0 %v1288
      %1298 = vmatmul.bf16.gmra.mxu0 %v1285
      %v1299 = vpop.f32.mrf.mxu0
      %v1300 = vadd.f32 0.0, %v1299
      %v1301 = vpop.f32.mrf.mxu0
      %1302 = vdwg.mxu0
      %1305 = vrot.lane.b32.xlu0 %v1279, 24
      %v1306 = vpop.permute.xlu0 %1305
      %1307 = vrot.lane.b32.xlu0 %v1300, 24
      %v1308 = vpop.permute.xlu0 %1307
      %vm1311 = vcmask 261312
      %1312 = vst.msk [vmem:[#allocation2] sm:$0xff] %vm1311, %v1306
      %1313 = vst.msk [vmem:[#allocation2 + $0x8] sm:$0xff] %vm1311, %v1308
      %v1314 = vld [vmem:[#allocation2] sm:$0xff]
      %v1315 = vld [vmem:[#allocation2 + $0x8] sm:$0xff]
      %v1316 = vpack.c.bf16 %v1315, %v1314
      %v1317 = vld [vmem:[%s643] sm:$0xf]
      %v1318 = vld [vmem:[%s643 + $0x4] sm:$0xf]
      %v1319 = vld [vmem:[%s643 + $0x8] sm:$0xf]
      %v1320 = vld [vmem:[%s643 + $0xc] sm:$0xf]
      %v1325 = vunpack.c.l.b16 %v1317
      %v1326 = vunpack.c.l.b16 %v1318
      %v1327 = vunpack.c.l.b16 %v1319
      %v1328 = vunpack.c.l.b16 %v1320
      %v1329 = vpack.c.b16 %v1326, %v1325
      %v1330 = vpack.c.b16 %v1328, %v1327
      %v1334 = vsel %vm690, %v1316, 0
      %1336 = vmatpush.bf16.msra.mxu0 0
      %1337 = vmatpush.bf16.msra.mxu0 0
      %1338 = vmatpush.bf16.msra.mxu0 0
      %1339 = vmatpush.bf16.msra.mxu0 0
      %1340 = vmatpush.bf16.msra.mxu0 0
      %1341 = vmatpush.bf16.msra.mxu0 0
      %1342 = vmatpush.bf16.msra.mxu0 %v1330
      %1343 = vmatpush.bf16.msra.mxu0 %v1329
      %1344 = vmatmul.bf16.gmra.mxu0 %v1334
      %v1345 = vpop.f32.mrf.mxu0
      %v1346 = vadd.f32 0.0, %v1345
      %v1347 = vpop.f32.mrf.mxu0
      %v1348 = vadd.f32 0.0, %v1347
      %1349 = vdwg.mxu0
      %v1350 = vadd.f32 %v686, %v1346
      %v1351 = vadd.f32 %v687, %v1348
      %v1352 = vld [vmem:[%s646] sm:$0x1]
      %v1354 = vperm.slane %v1352, 0
      %v1356 = vadd.f32 %v1350, %v1354
      %v1357 = vadd.f32 %v1351, %v1354
      %v1358 = vld [vmem:[%s649] sm:$0x1]
      %v1359 = vld [vmem:[%s652] sm:$0x1]
      %v1360 = vsel %vm690, %v1356, 0.0
      %1361 = vadd.xlane.f32.xlu0 %v1360
      %v1362 = vpop.xlane.xlu0 %1361
      %v1363 = vsel %vm690, %v1357, 0.0
      %1364 = vadd.xlane.f32.xlu0 %v1363
      %v1365 = vpop.xlane.xlu0 %1364
      %v1366 = vmul.f32 %v1362, %v703
      %v1367 = vmul.f32 %v1365, %v703
      %v1368 = vsub.f32 %v1356, %v1366
      %v1369 = vsub.f32 %v1357, %v1367
      %v1370 = vmul.f32 %v1368, %v1368
      %v1371 = vmul.f32 %v1369, %v1369
      %v1372 = vsel %vm690, %v1370, 0.0
      %1373 = vadd.xlane.f32.xlu0 %v1372
      %v1374 = vpop.xlane.xlu0 %1373
      %v1375 = vsel %vm690, %v1371, 0.0
      %1376 = vadd.xlane.f32.xlu0 %v1375
      %v1377 = vpop.xlane.xlu0 %1376
      %v1378 = vmul.f32 %v1374, %v703
      %v1379 = vmul.f32 %v1377, %v703
      %v1380 = vadd.f32 %v1378, 1e-05
      %v1381 = vadd.f32 %v1379, 1e-05
      %v1382 = vrsqrt.pop %v1380
      %v1383 = vmul.f32 %v1382, %v1380
      %v1384 = vmul.f32 %v1383, %v1382
      %v1385 = vmul.f32 0.5, %v1384
      %v1386 = vsub.f32 1.5, %v1385
      %v1387 = vmul.f32 %v1382, %v1386
      %vm1388 = vweird.f32 %v1380
      %vm1389 = vweird.f32 %v1382
      %vm1390 = vmor %vm1388, %vm1389
      %v1391 = vsel %vm1390, %v1382, %v1387
      %v1392 = vrsqrt.pop %v1381
      %v1393 = vmul.f32 %v1392, %v1381
      %v1394 = vmul.f32 %v1393, %v1392
      %v1395 = vmul.f32 0.5, %v1394
      %v1396 = vsub.f32 1.5, %v1395
      %v1397 = vmul.f32 %v1392, %v1396
      %vm1398 = vweird.f32 %v1381
      %vm1399 = vweird.f32 %v1392
      %vm1400 = vmor %vm1398, %vm1399
      %v1401 = vsel %vm1400, %v1392, %v1397
      %v1402 = vmul.f32 %v1368, %v1391
      %v1403 = vmul.f32 %v1369, %v1401
      %v1405 = vperm.slane %v1358, 0
      %v1407 = vmul.f32 %v1402, %v1405
      %v1408 = vmul.f32 %v1403, %v1405
      %v1410 = vperm.slane %v1359, 0
      %v1412 = vadd.f32 %v1407, %v1410
      %v1413 = vadd.f32 %v1408, %v1410
      %v1414 = vpack.c.bf16 %v1413, %v1412
      %v1415 = vld [vmem:[%s657] sm:$0xf]
      %v1416 = vld [vmem:[%s657 + $0x4] sm:$0xf]
      %v1417 = vld [vmem:[%s657 + $0x8] sm:$0xf]
      %v1418 = vld [vmem:[%s657 + $0xc] sm:$0xf]
      %v1419 = vld [vmem:[%s660] sm:$0x1]
      %v1421 = vperm.slane %v1419, 0
      %v1427 = vunpack.c.l.b16 %v1415
      %v1428 = vunpack.c.l.b16 %v1416
      %v1429 = vunpack.c.l.b16 %v1417
      %v1430 = vunpack.c.l.b16 %v1418
      %v1431 = vpack.c.b16 %v1428, %v1427
      %v1432 = vpack.c.b16 %v1430, %v1429
      %v1436 = vsel %vm690, %v1414, 0
      %1438 = vmatpush.bf16.msra.mxu0 0
      %1439 = vmatpush.bf16.msra.mxu0 0
      %1440 = vmatpush.bf16.msra.mxu0 0
      %1441 = vmatpush.bf16.msra.mxu0 0
      %1442 = vmatpush.bf16.msra.mxu0 0
      %1443 = vmatpush.bf16.msra.mxu0 0
      %1444 = vmatpush.bf16.msra.mxu0 %v1432
      %1445 = vmatpush.bf16.msra.mxu0 %v1431
      %1446 = vmatmul.bf16.gmra.mxu0 %v1436
      %v1447 = vpop.f32.mrf.mxu0
      %v1448 = vadd.f32 %v1421, %v1447
      %v1449 = vpop.f32.mrf.mxu0
      %v1450 = vadd.f32 %v1421, %v1449
      %1451 = vdwg.mxu0
      %v1452 = vmul.f32 %v1448, 1.702
      %v1453 = vmul.f32 %v1450, 1.702
      %v1454 = vxor.u32 %v1452, 2147483648
      %v1455 = vxor.u32 %v1453, 2147483648
      %v1456 = vmul.f32 %v1454, 1.442695
      %v1457 = vpow.pop %v1456
      %v1458 = vmul.f32 %v1455, 1.442695
      %v1459 = vpow.pop %v1458
      %v1460 = vadd.f32 %v1457, 1.0
      %v1461 = vadd.f32 %v1459, 1.0
      %v1462 = vrcp.pop %v1460
      %v1463 = vmul.f32 %v1460, %v1462
      %v1464 = vsub.f32 1.0, %v1463
      %v1465 = vmul.f32 %v1462, %v1464
      %v1466 = vadd.f32 %v1462, %v1465
      %vm1467 = vweird.f32 %v1460
      %vm1468 = vweird.f32 %v1462
      %vm1469 = vmor %vm1467, %vm1468
      %v1470 = vsel %vm1469, %v1462, %v1466
      %v1471 = vand.u32 2147483647, %v1460
      %vm1472 = vcmp.eq.f32.partialorder %v1471, 8.507059e+37
      %v1473 = vand.u32 %v1460, 2147483648
      %v1474 = vor.u32 1.1754944e-38, %v1473
      %v1475 = vsel %vm1472, %v1474, %v1470
      %v1476 = vmul.f32 1.0, %v1475
      %v1477 = vrcp.pop %v1461
      %v1478 = vmul.f32 %v1461, %v1477
      %v1479 = vsub.f32 1.0, %v1478
      %v1480 = vmul.f32 %v1477, %v1479
      %v1481 = vadd.f32 %v1477, %v1480
      %vm1482 = vweird.f32 %v1461
      %vm1483 = vweird.f32 %v1477
      %vm1484 = vmor %vm1482, %vm1483
      %v1485 = vsel %vm1484, %v1477, %v1481
      %v1486 = vand.u32 2147483647, %v1461
      %vm1487 = vcmp.eq.f32.partialorder %v1486, 8.507059e+37
      %v1488 = vand.u32 %v1461, 2147483648
      %v1489 = vor.u32 1.1754944e-38, %v1488
      %v1490 = vsel %vm1487, %v1489, %v1485
      %v1491 = vmul.f32 1.0, %v1490
      %v1492 = vmul.f32 %v1448, %v1476
      %v1493 = vmul.f32 %v1450, %v1491
      %v1494 = vpack.c.bf16 %v1493, %v1492
      %v1495 = vld [vmem:[%s665] sm:$0xf]
      %v1496 = vld [vmem:[%s665 + $0x4] sm:$0xf]
      %v1497 = vld [vmem:[%s665 + $0x8] sm:$0xf]
      %v1498 = vld [vmem:[%s665 + $0xc] sm:$0xf]
      %v1499 = vld [vmem:[%s665 + $0x10] sm:$0xf]
      %v1500 = vld [vmem:[%s665 + $0x14] sm:$0xf]
      %v1501 = vld [vmem:[%s665 + $0x18] sm:$0xf]
      %v1502 = vld [vmem:[%s665 + $0x1c] sm:$0xf]
      %v1503 = vld [vmem:[%s665 + $0x20] sm:$0xf]
      %v1504 = vld [vmem:[%s665 + $0x24] sm:$0xf]
      %v1505 = vld [vmem:[%s665 + $0x28] sm:$0xf]
      %v1506 = vld [vmem:[%s665 + $0x2c] sm:$0xf]
      %v1507 = vld [vmem:[%s665 + $0x30] sm:$0xf]
      %v1508 = vld [vmem:[%s665 + $0x34] sm:$0xf]
      %v1509 = vld [vmem:[%s665 + $0x38] sm:$0xf]
      %v1510 = vld [vmem:[%s665 + $0x3c] sm:$0xf]
      %v1527 = vunpack.c.l.b16 %v1495
      %v1528 = vunpack.c.l.b16 %v1496
      %v1529 = vunpack.c.l.b16 %v1497
      %v1530 = vunpack.c.l.b16 %v1498
      %v1531 = vunpack.c.l.b16 %v1499
      %v1532 = vunpack.c.l.b16 %v1500
      %v1533 = vunpack.c.l.b16 %v1501
      %v1534 = vunpack.c.l.b16 %v1502
      %v1535 = vunpack.c.l.b16 %v1503
      %v1536 = vunpack.c.l.b16 %v1504
      %v1537 = vunpack.c.l.b16 %v1505
      %v1538 = vunpack.c.l.b16 %v1506
      %v1539 = vunpack.c.l.b16 %v1507
      %v1540 = vunpack.c.l.b16 %v1508
      %v1541 = vunpack.c.l.b16 %v1509
      %v1542 = vunpack.c.l.b16 %v1510
      %v1543 = vpack.c.b16 %v1528, %v1527
      %v1544 = vpack.c.b16 %v1530, %v1529
      %v1545 = vpack.c.b16 %v1532, %v1531
      %v1546 = vpack.c.b16 %v1534, %v1533
      %v1547 = vpack.c.b16 %v1536, %v1535
      %v1548 = vpack.c.b16 %v1538, %v1537
      %v1549 = vpack.c.b16 %v1540, %v1539
      %v1550 = vpack.c.b16 %v1542, %v1541
      %1559 = vmatpush.bf16.msra.mxu0 %v1550
      %1560 = vmatpush.bf16.msra.mxu0 %v1549
      %1561 = vmatpush.bf16.msra.mxu0 %v1548
      %1562 = vmatpush.bf16.msra.mxu0 %v1547
      %1563 = vmatpush.bf16.msra.mxu0 %v1546
      %1564 = vmatpush.bf16.msra.mxu0 %v1545
      %1565 = vmatpush.bf16.msra.mxu0 %v1544
      %1566 = vmatpush.bf16.msra.mxu0 %v1543
      %1567 = vmatmul.bf16.gmra.mxu0 %v1494
      %v1568 = vpop.f32.mrf.mxu0
      %v1569 = vadd.f32 0.0, %v1568
      %v1570 = vpop.f32.mrf.mxu0
      %v1571 = vadd.f32 0.0, %v1570
      %1572 = vdwg.mxu0
      %v1573 = vadd.f32 %v1356, %v1569
      %v1574 = vadd.f32 %v1357, %v1571
      %v1575 = vld [vmem:[%s668] sm:$0x1]
      %v1577 = vperm.slane %v1575, 0
      %v1579 = vadd.f32 %v1573, %v1577
      %v1580 = vadd.f32 %v1574, %v1577
      %1581 = vst.msk [vmem:[%s673] sm:$0xff] %vm690, %v1579
      %1582 = vst.msk [vmem:[%s673 + $0x8] sm:$0xff] %vm690, %v1580
      %s1583 = smul.u32 2, %s29
      %p1584 = scmp.lt.s32.totalorder %s1583, 1
      %s1585 = scalar_select %p1584, %s1583, 1
      %s1586 = smul.addr %s1585, 8
      %s1587 = scalar_lea.vmem %s14, %s1586
      // Predicated region
      $region81: #{frozen_clip_text_embedder_forward.2} parent=75 // pred_check
        %p1588 = pneg %p414
      $region82: #{frozen_clip_text_embedder_forward.2} parent=75 // pred_check_branch
        %1590 = sbr.rel (%p1588) target = $region84
      $region83: #{frozen_clip_text_embedder_forward.2} parent=75 // pred_region
        %s1591 = smul.u32 2, %s29
      $region84: #{frozen_clip_text_embedder_forward.2} parent=75 // pred_fallthru
        _
      // Predicated region
      $region85: #{frozen_clip_text_embedder_forward.2} parent=75 // pred_check
        %p1592 = pneg %p414
      $region86: #{frozen_clip_text_embedder_forward.2} parent=75 // pred_check_branch
        %1594 = sbr.rel (%p1592) target = $region88
      $region87: #{frozen_clip_text_embedder_forward.2} parent=75 // pred_region
        %s1595 = smul.u32 2, %s29
        %p1596 = scmp.lt.s32.totalorder %s1595, 1
        %s1597 = scalar_select %p1596, %s1595, 1
        %s1598 = smul.addr %s1597, 8
        %s1599 = scalar_lea.vmem %s14, %s1598
      $region88: #{frozen_clip_text_embedder_forward.2} parent=75 // pred_fallthru
        _
    $region76: #{frozen_clip_text_embedder_forward.2} parent=5 // pred_fallthru
      _
    %p1600 = scmp.le.s32.totalorder 2, %s20
    // Predicated region
    $region89: #{frozen_clip_text_embedder_forward.2} parent=5 // pred_check
      %p1601 = pneg %p1600
    $region90: #{frozen_clip_text_embedder_forward.2} parent=5 // pred_check_branch
      %1603 = sbr.rel (%p1601) target = $region92
    $region91: #{frozen_clip_text_embedder_forward.2} parent=5 // pred_region
      %s1604 = ssub.s32 %s20, 2
    $region92: #{frozen_clip_text_embedder_forward.2} parent=5 // pred_fallthru
      _
  $region6: #{frozen_clip_text_embedder_forward.2} parent=0 // loop_footer
    %s24 = sadd.s32 1, %s20
  $region7: #{frozen_clip_text_embedder_forward.2} parent=0 // loop_footer_branch
    %19 = sbr.rel target = $region3
  $region8: #{frozen_clip_text_embedder_forward.2} parent=0 // loop_exit
    _

</llo_original>
